<compile_context>
chip_gen: v6e
topology: v6e:2x2x1
jax: 0.10.0
libtpu: 0.0.40
codegen_flags: <defaults>
</compile_context>

<pallas_src>
import functools

import jax
import jax.numpy as jnp
from jax.experimental import pallas as pl
from jax.experimental.pallas import tpu as pltpu


def lstm_ball_kernel(
    x_ref,        # (B, T*I)   batch-first x with time flattened into lanes
    wcat0_ref,    # (H+I, 4H)  rows = [W_hh0^T ; W_ih0^T]
    b0_ref,       # (1, 4H)    bias_ih_l0 + bias_hh_l0
    wcat1_ref,    # (2H, 4H)   rows = [W_hh1^T ; W_ih1^T]
    b1_ref,       # (1, 4H)    bias_ih_l1 + bias_hh_l1
    wout_ref,     # (H, out_dim)
    bout_ref,     # (1, out_dim)
    out_ref,      # (B, out_dim)
    *, T, I, H,
):
    B = x_ref.shape[0]

    # Everything is tiny -> load once, keep resident in vregs/VMEM.
    x_all = x_ref[...]          # (B, T*I)
    wcat0 = wcat0_ref[...]
    wcat1 = wcat1_ref[...]
    b0 = b0_ref[...]
    b1 = b1_ref[...]

    def gates_to_hc(gates, c):
        # PyTorch gate order: i, f, g, o.
        i = jax.nn.sigmoid(gates[:, 0 * H:1 * H])
        f = jax.nn.sigmoid(gates[:, 1 * H:2 * H])
        g = jnp.tanh(gates[:, 2 * H:3 * H])
        o = jax.nn.sigmoid(gates[:, 3 * H:4 * H])
        c_new = f * c + i * g
        h_new = o * jnp.tanh(c_new)
        return h_new, c_new

    zero = jnp.zeros((B, H), jnp.float32)
    h0, c0, h1, c1 = zero, zero, zero, zero

    # Fully-unrolled static time loop: all slices are static, h/c stay in
    # registers, and one stacked matmul per layer feeds the MXU each step.
    for t in range(T):
        x_t = x_all[:, t * I:(t + 1) * I]                        # (B, I)
        # Layer 0: gates = h0 @ W_hh0^T + x_t @ W_ih0^T + b0  (single matmul)
        g0 = jnp.dot(jnp.concatenate([h0, x_t], axis=1), wcat0,
                     preferred_element_type=jnp.float32) + b0
        h0, c0 = gates_to_hc(g0, c0)
        # Layer 1: input = layer-0 hidden (no dropout in eval mode).
        g1 = jnp.dot(jnp.concatenate([h1, h0], axis=1), wcat1,
                     preferred_element_type=jnp.float32) + b1
        h1, c1 = gates_to_hc(g1, c1)

    # Linear head on the last timestep's top-layer hidden state.
    out_ref[...] = (
        jnp.dot(h1, wout_ref[...], preferred_element_type=jnp.float32)
        + bout_ref[...]
    ).astype(out_ref.dtype)


@jax.jit
def lstm_ball_forward(x, params):
    """x: [B, T, input_size] (batch_first, like PyTorch).

    Returns [B, num_classes*output_size]."""
    B, T, I = x.shape
    H = params["wcat1"].shape[0] // 2
    out_dim = params["wout_t"].shape[1]

    # Free row-major reshape (no transpose / extra HBM pass on x).
    x2 = x.reshape(B, T * I)

    kernel = functools.partial(lstm_ball_kernel, T=T, I=I, H=H)
    vmem = pl.BlockSpec(memory_space=pltpu.MemorySpace.VMEM)  # whole-array resident

    return pl.pallas_call(
        kernel,
        out_shape=jax.ShapeDtypeStruct((B, out_dim), jnp.float32),
        in_specs=[vmem] * 7,
        out_specs=vmem,
    )(
        x2,
        params["wcat0"], params["b0"],
        params["wcat1"], params["b1"],
        params["wout_t"], params["bout"],
    )


def init_params(key, input_size, hidden_size, num_classes, output_size):
    """Deterministic init mirroring the module's _init_weights:
    xavier_uniform for weight_ih, orthogonal for weight_hh, zeros for biases.
    Linear weight keeps a uniform (kaiming-like) init, Linear bias is zero."""
    H, I = hidden_size, input_size
    k = jax.random.split(key, 5)
    xavier = jax.nn.initializers.glorot_uniform()
    ortho = jax.nn.initializers.orthogonal()

    w_ih0 = xavier(k[0], (4 * H, I), jnp.float32)     # weight_ih_l0
    w_hh0 = ortho(k[1], (4 * H, H), jnp.float32)      # weight_hh_l0
    w_ih1 = xavier(k[2], (4 * H, H), jnp.float32)     # weight_ih_l1
    w_hh1 = ortho(k[3], (4 * H, H), jnp.float32)      # weight_hh_l1
    # bias_ih_* and bias_hh_* are zero-initialized; fold them together.
    b0 = jnp.zeros((1, 4 * H), jnp.float32)
    b1 = jnp.zeros((1, 4 * H), jnp.float32)

    out_dim = num_classes * output_size
    bound = 1.0 / jnp.sqrt(jnp.float32(H))
    w_out = jax.random.uniform(k[4], (out_dim, H), jnp.float32, -bound, bound)
    b_out = jnp.zeros((1, out_dim), jnp.float32)

    # Stack [W_hh^T ; W_ih^T] so each recurrence step is one matmul on
    # concat([h, x]).
    wcat0 = jnp.concatenate([w_hh0.T, w_ih0.T], axis=0)   # (H+I, 4H)
    wcat1 = jnp.concatenate([w_hh1.T, w_ih1.T], axis=0)   # (2H, 4H)

    return {
        # kernel params
        "wcat0": wcat0, "b0": b0,
        "wcat1": wcat1, "b1": b1,
        "wout_t": w_out.T, "bout": b_out,
        # unstacked copies for the pure-JAX reference / cross-check
        "wih0_t": w_ih0.T, "whh0_t": w_hh0.T,
        "wih1_t": w_ih1.T, "whh1_t": w_hh1.T,
    }


def reference_forward(x, params):
    """Pure-JAX reference (lax.scan, unstacked weights) for verification."""
    B, T, I = x.shape
    H = params["whh0_t"].shape[0]

    def cell(x_t, h, c, wih_t, whh_t, b):
        gates = x_t @ wih_t + h @ whh_t + b
        i = jax.nn.sigmoid(gates[:, 0 * H:1 * H])
        f = jax.nn.sigmoid(gates[:, 1 * H:2 * H])
        g = jnp.tanh(gates[:, 2 * H:3 * H])
        o = jax.nn.sigmoid(gates[:, 3 * H:4 * H])
        c = f * c + i * g
        h = o * jnp.tanh(c)
        return h, c

    def step(carry, x_t):
        h0, c0, h1, c1 = carry
        h0, c0 = cell(x_t, h0, c0, params["wih0_t"], params["whh0_t"], params["b0"])
        h1, c1 = cell(h0, h1, c1, params["wih1_t"], params["whh1_t"], params["b1"])
        return (h0, c0, h1, c1), None

    z = jnp.zeros((B, H), jnp.float32)
    (h0, c0, h1, c1), _ = jax.lax.scan(step, (z, z, z, z),
                                       jnp.transpose(x, (1, 0, 2)))
    return h1 @ params["wout_t"] + params["bout"]


if __name__ == "__main__":
    # Small shapes consistent with the module's forward.
    B, T = 2, 8
    input_size, hidden_size = 8, 32
    num_classes, output_size = 3, 4

    key = jax.random.PRNGKey(0)
    kx, kp = jax.random.split(key)
    x = jax.random.normal(kx, (B, T, input_size), jnp.float32)
    params = init_params(kp, input_size, hidden_size, num_classes, output_size)

    out = lstm_ball_forward(x, params)
    out = jax.block_until_ready(out)

    ref = reference_forward(x, params)
    assert out.shape == (B, num_classes * output_size)
    assert jnp.allclose(out, ref, atol=1e-4, rtol=1e-4), (out, ref)

    print("KERNEL_OK")
</pallas_src>

<mosaic_0001>
module attributes {stable_mosaic.version = 11 : i64} {
  func.func @lstm_ball_kernel(%arg0: memref<2x64xf32, #tpu.memory_space<vmem>>, %arg1: memref<40x128xf32, #tpu.memory_space<vmem>>, %arg2: memref<1x128xf32, #tpu.memory_space<vmem>>, %arg3: memref<64x128xf32, #tpu.memory_space<vmem>>, %arg4: memref<1x128xf32, #tpu.memory_space<vmem>>, %arg5: memref<32x12xf32, #tpu.memory_space<vmem>>, %arg6: memref<1x12xf32, #tpu.memory_space<vmem>>, %arg7: memref<2x12xf32, #tpu.memory_space<vmem>>) attributes {dimension_semantics = [], scalar_prefetch = 0 : i64, scratch_operands = 0 : i64, tpu.core_type = #tpu.core_type<tc>} {
    %c0 = arith.constant 0 : index
    %c0_0 = arith.constant 0 : index
    %0 = vector.load %arg0[%c0, %c0_0] : memref<2x64xf32, #tpu.memory_space<vmem>>, vector<2x64xf32>
    %c0_1 = arith.constant 0 : index
    %c0_2 = arith.constant 0 : index
    %1 = vector.load %arg1[%c0_1, %c0_2] : memref<40x128xf32, #tpu.memory_space<vmem>>, vector<40x128xf32>
    %c0_3 = arith.constant 0 : index
    %c0_4 = arith.constant 0 : index
    %2 = vector.load %arg3[%c0_3, %c0_4] : memref<64x128xf32, #tpu.memory_space<vmem>>, vector<64x128xf32>
    %c0_5 = arith.constant 0 : index
    %c0_6 = arith.constant 0 : index
    %3 = vector.load %arg2[%c0_5, %c0_6] : memref<1x128xf32, #tpu.memory_space<vmem>>, vector<1x128xf32>
    %c0_7 = arith.constant 0 : index
    %c0_8 = arith.constant 0 : index
    %4 = vector.load %arg4[%c0_7, %c0_8] : memref<1x128xf32, #tpu.memory_space<vmem>>, vector<1x128xf32>
    %cst = arith.constant 0.000000e+00 : f32
    %5 = vector.broadcast %cst : f32 to vector<2x32xf32>
    %6 = vector.extract_strided_slice %0 {offsets = [0, 0], sizes = [2, 8], strides = [1, 1]} : vector<2x64xf32> to vector<2x8xf32>
    %7 = tpu.concatenate %5, %6 in 1 : vector<2x32xf32>, vector<2x8xf32> -> vector<2x40xf32>
    %cst_9 = arith.constant dense<0.000000e+00> : vector<2x128xf32>
    %8 = tpu.matmul %7, %1, %cst_9 {dimension_numbers = #tpu.dot_dimension_numbers<[1], [0], [0], [1], [0, 0, 1, 1], [], []>} : vector<2x40xf32>, vector<40x128xf32>, vector<2x128xf32> -> vector<2x128xf32>
    %9 = vector.broadcast %3 : vector<1x128xf32> to vector<2x128xf32>
    %10 = arith.addf %8, %9 : vector<2x128xf32>
    %11 = vector.extract_strided_slice %10 {offsets = [0, 0], sizes = [2, 32], strides = [1, 1]} : vector<2x128xf32> to vector<2x32xf32>
    %12 = arith.negf %11 : vector<2x32xf32>
    %13 = math.exp %12 : vector<2x32xf32>
    %cst_10 = arith.constant 1.000000e+00 : f32
    %14 = vector.broadcast %cst_10 : f32 to vector<2x32xf32>
    %15 = arith.addf %14, %13 : vector<2x32xf32>
    %16 = arith.divf %14, %15 : vector<2x32xf32>
    %17 = vector.extract_strided_slice %10 {offsets = [0, 32], sizes = [2, 32], strides = [1, 1]} : vector<2x128xf32> to vector<2x32xf32>
    %18 = arith.negf %17 : vector<2x32xf32>
    %19 = math.exp %18 : vector<2x32xf32>
    %cst_11 = arith.constant 1.000000e+00 : f32
    %20 = vector.broadcast %cst_11 : f32 to vector<2x32xf32>
    %21 = arith.addf %20, %19 : vector<2x32xf32>
    %22 = arith.divf %20, %21 : vector<2x32xf32>
    %23 = vector.extract_strided_slice %10 {offsets = [0, 64], sizes = [2, 32], strides = [1, 1]} : vector<2x128xf32> to vector<2x32xf32>
    %24 = math.tanh %23 : vector<2x32xf32>
    %25 = vector.extract_strided_slice %10 {offsets = [0, 96], sizes = [2, 32], strides = [1, 1]} : vector<2x128xf32> to vector<2x32xf32>
    %26 = arith.negf %25 : vector<2x32xf32>
    %27 = math.exp %26 : vector<2x32xf32>
    %cst_12 = arith.constant 1.000000e+00 : f32
    %28 = vector.broadcast %cst_12 : f32 to vector<2x32xf32>
    %29 = arith.addf %28, %27 : vector<2x32xf32>
    %30 = arith.divf %28, %29 : vector<2x32xf32>
    %31 = arith.mulf %22, %5 : vector<2x32xf32>
    %32 = arith.mulf %16, %24 : vector<2x32xf32>
    %33 = arith.addf %31, %32 : vector<2x32xf32>
    %34 = math.tanh %33 : vector<2x32xf32>
    %35 = arith.mulf %30, %34 : vector<2x32xf32>
    %36 = tpu.concatenate %5, %35 in 1 : vector<2x32xf32>, vector<2x32xf32> -> vector<2x64xf32>
    %cst_13 = arith.constant dense<0.000000e+00> : vector<2x128xf32>
    %37 = tpu.matmul %36, %2, %cst_13 {dimension_numbers = #tpu.dot_dimension_numbers<[1], [0], [0], [1], [0, 0, 1, 1], [], []>} : vector<2x64xf32>, vector<64x128xf32>, vector<2x128xf32> -> vector<2x128xf32>
    %38 = vector.broadcast %4 : vector<1x128xf32> to vector<2x128xf32>
    %39 = arith.addf %37, %38 : vector<2x128xf32>
    %40 = vector.extract_strided_slice %39 {offsets = [0, 0], sizes = [2, 32], strides = [1, 1]} : vector<2x128xf32> to vector<2x32xf32>
    %41 = arith.negf %40 : vector<2x32xf32>
    %42 = math.exp %41 : vector<2x32xf32>
    %cst_14 = arith.constant 1.000000e+00 : f32
    %43 = vector.broadcast %cst_14 : f32 to vector<2x32xf32>
    %44 = arith.addf %43, %42 : vector<2x32xf32>
    %45 = arith.divf %43, %44 : vector<2x32xf32>
    %46 = vector.extract_strided_slice %39 {offsets = [0, 32], sizes = [2, 32], strides = [1, 1]} : vector<2x128xf32> to vector<2x32xf32>
    %47 = arith.negf %46 : vector<2x32xf32>
    %48 = math.exp %47 : vector<2x32xf32>
    %cst_15 = arith.constant 1.000000e+00 : f32
    %49 = vector.broadcast %cst_15 : f32 to vector<2x32xf32>
    %50 = arith.addf %49, %48 : vector<2x32xf32>
    %51 = arith.divf %49, %50 : vector<2x32xf32>
    %52 = vector.extract_strided_slice %39 {offsets = [0, 64], sizes = [2, 32], strides = [1, 1]} : vector<2x128xf32> to vector<2x32xf32>
    %53 = math.tanh %52 : vector<2x32xf32>
    %54 = vector.extract_strided_slice %39 {offsets = [0, 96], sizes = [2, 32], strides = [1, 1]} : vector<2x128xf32> to vector<2x32xf32>
    %55 = arith.negf %54 : vector<2x32xf32>
    %56 = math.exp %55 : vector<2x32xf32>
    %cst_16 = arith.constant 1.000000e+00 : f32
    %57 = vector.broadcast %cst_16 : f32 to vector<2x32xf32>
    %58 = arith.addf %57, %56 : vector<2x32xf32>
    %59 = arith.divf %57, %58 : vector<2x32xf32>
    %60 = arith.mulf %51, %5 : vector<2x32xf32>
    %61 = arith.mulf %45, %53 : vector<2x32xf32>
    %62 = arith.addf %60, %61 : vector<2x32xf32>
    %63 = math.tanh %62 : vector<2x32xf32>
    %64 = arith.mulf %59, %63 : vector<2x32xf32>
    %65 = vector.extract_strided_slice %0 {offsets = [0, 8], sizes = [2, 8], strides = [1, 1]} : vector<2x64xf32> to vector<2x8xf32>
    %66 = tpu.concatenate %35, %65 in 1 : vector<2x32xf32>, vector<2x8xf32> -> vector<2x40xf32>
    %cst_17 = arith.constant dense<0.000000e+00> : vector<2x128xf32>
    %67 = tpu.matmul %66, %1, %cst_17 {dimension_numbers = #tpu.dot_dimension_numbers<[1], [0], [0], [1], [0, 0, 1, 1], [], []>} : vector<2x40xf32>, vector<40x128xf32>, vector<2x128xf32> -> vector<2x128xf32>
    %68 = vector.broadcast %3 : vector<1x128xf32> to vector<2x128xf32>
    %69 = arith.addf %67, %68 : vector<2x128xf32>
    %70 = vector.extract_strided_slice %69 {offsets = [0, 0], sizes = [2, 32], strides = [1, 1]} : vector<2x128xf32> to vector<2x32xf32>
    %71 = arith.negf %70 : vector<2x32xf32>
    %72 = math.exp %71 : vector<2x32xf32>
    %cst_18 = arith.constant 1.000000e+00 : f32
    %73 = vector.broadcast %cst_18 : f32 to vector<2x32xf32>
    %74 = arith.addf %73, %72 : vector<2x32xf32>
    %75 = arith.divf %73, %74 : vector<2x32xf32>
    %76 = vector.extract_strided_slice %69 {offsets = [0, 32], sizes = [2, 32], strides = [1, 1]} : vector<2x128xf32> to vector<2x32xf32>
    %77 = arith.negf %76 : vector<2x32xf32>
    %78 = math.exp %77 : vector<2x32xf32>
    %cst_19 = arith.constant 1.000000e+00 : f32
    %79 = vector.broadcast %cst_19 : f32 to vector<2x32xf32>
    %80 = arith.addf %79, %78 : vector<2x32xf32>
    %81 = arith.divf %79, %80 : vector<2x32xf32>
    %82 = vector.extract_strided_slice %69 {offsets = [0, 64], sizes = [2, 32], strides = [1, 1]} : vector<2x128xf32> to vector<2x32xf32>
    %83 = math.tanh %82 : vector<2x32xf32>
    %84 = vector.extract_strided_slice %69 {offsets = [0, 96], sizes = [2, 32], strides = [1, 1]} : vector<2x128xf32> to vector<2x32xf32>
    %85 = arith.negf %84 : vector<2x32xf32>
    %86 = math.exp %85 : vector<2x32xf32>
    %cst_20 = arith.constant 1.000000e+00 : f32
    %87 = vector.broadcast %cst_20 : f32 to vector<2x32xf32>
    %88 = arith.addf %87, %86 : vector<2x32xf32>
    %89 = arith.divf %87, %88 : vector<2x32xf32>
    %90 = arith.mulf %81, %33 : vector<2x32xf32>
    %91 = arith.mulf %75, %83 : vector<2x32xf32>
    %92 = arith.addf %90, %91 : vector<2x32xf32>
    %93 = math.tanh %92 : vector<2x32xf32>
    %94 = arith.mulf %89, %93 : vector<2x32xf32>
    %95 = tpu.concatenate %64, %94 in 1 : vector<2x32xf32>, vector<2x32xf32> -> vector<2x64xf32>
    %cst_21 = arith.constant dense<0.000000e+00> : vector<2x128xf32>
    %96 = tpu.matmul %95, %2, %cst_21 {dimension_numbers = #tpu.dot_dimension_numbers<[1], [0], [0], [1], [0, 0, 1, 1], [], []>} : vector<2x64xf32>, vector<64x128xf32>, vector<2x128xf32> -> vector<2x128xf32>
    %97 = vector.broadcast %4 : vector<1x128xf32> to vector<2x128xf32>
    %98 = arith.addf %96, %97 : vector<2x128xf32>
    %99 = vector.extract_strided_slice %98 {offsets = [0, 0], sizes = [2, 32], strides = [1, 1]} : vector<2x128xf32> to vector<2x32xf32>
    %100 = arith.negf %99 : vector<2x32xf32>
    %101 = math.exp %100 : vector<2x32xf32>
    %cst_22 = arith.constant 1.000000e+00 : f32
    %102 = vector.broadcast %cst_22 : f32 to vector<2x32xf32>
    %103 = arith.addf %102, %101 : vector<2x32xf32>
    %104 = arith.divf %102, %103 : vector<2x32xf32>
    %105 = vector.extract_strided_slice %98 {offsets = [0, 32], sizes = [2, 32], strides = [1, 1]} : vector<2x128xf32> to vector<2x32xf32>
    %106 = arith.negf %105 : vector<2x32xf32>
    %107 = math.exp %106 : vector<2x32xf32>
    %cst_23 = arith.constant 1.000000e+00 : f32
    %108 = vector.broadcast %cst_23 : f32 to vector<2x32xf32>
    %109 = arith.addf %108, %107 : vector<2x32xf32>
    %110 = arith.divf %108, %109 : vector<2x32xf32>
    %111 = vector.extract_strided_slice %98 {offsets = [0, 64], sizes = [2, 32], strides = [1, 1]} : vector<2x128xf32> to vector<2x32xf32>
    %112 = math.tanh %111 : vector<2x32xf32>
    %113 = vector.extract_strided_slice %98 {offsets = [0, 96], sizes = [2, 32], strides = [1, 1]} : vector<2x128xf32> to vector<2x32xf32>
    %114 = arith.negf %113 : vector<2x32xf32>
    %115 = math.exp %114 : vector<2x32xf32>
    %cst_24 = arith.constant 1.000000e+00 : f32
    %116 = vector.broadcast %cst_24 : f32 to vector<2x32xf32>
    %117 = arith.addf %116, %115 : vector<2x32xf32>
    %118 = arith.divf %116, %117 : vector<2x32xf32>
    %119 = arith.mulf %110, %62 : vector<2x32xf32>
    %120 = arith.mulf %104, %112 : vector<2x32xf32>
    %121 = arith.addf %119, %120 : vector<2x32xf32>
    %122 = math.tanh %121 : vector<2x32xf32>
    %123 = arith.mulf %118, %122 : vector<2x32xf32>
    %124 = vector.extract_strided_slice %0 {offsets = [0, 16], sizes = [2, 8], strides = [1, 1]} : vector<2x64xf32> to vector<2x8xf32>
    %125 = tpu.concatenate %94, %124 in 1 : vector<2x32xf32>, vector<2x8xf32> -> vector<2x40xf32>
    %cst_25 = arith.constant dense<0.000000e+00> : vector<2x128xf32>
    %126 = tpu.matmul %125, %1, %cst_25 {dimension_numbers = #tpu.dot_dimension_numbers<[1], [0], [0], [1], [0, 0, 1, 1], [], []>} : vector<2x40xf32>, vector<40x128xf32>, vector<2x128xf32> -> vector<2x128xf32>
    %127 = vector.broadcast %3 : vector<1x128xf32> to vector<2x128xf32>
    %128 = arith.addf %126, %127 : vector<2x128xf32>
    %129 = vector.extract_strided_slice %128 {offsets = [0, 0], sizes = [2, 32], strides = [1, 1]} : vector<2x128xf32> to vector<2x32xf32>
    %130 = arith.negf %129 : vector<2x32xf32>
    %131 = math.exp %130 : vector<2x32xf32>
    %cst_26 = arith.constant 1.000000e+00 : f32
    %132 = vector.broadcast %cst_26 : f32 to vector<2x32xf32>
    %133 = arith.addf %132, %131 : vector<2x32xf32>
    %134 = arith.divf %132, %133 : vector<2x32xf32>
    %135 = vector.extract_strided_slice %128 {offsets = [0, 32], sizes = [2, 32], strides = [1, 1]} : vector<2x128xf32> to vector<2x32xf32>
    %136 = arith.negf %135 : vector<2x32xf32>
    %137 = math.exp %136 : vector<2x32xf32>
    %cst_27 = arith.constant 1.000000e+00 : f32
    %138 = vector.broadcast %cst_27 : f32 to vector<2x32xf32>
    %139 = arith.addf %138, %137 : vector<2x32xf32>
    %140 = arith.divf %138, %139 : vector<2x32xf32>
    %141 = vector.extract_strided_slice %128 {offsets = [0, 64], sizes = [2, 32], strides = [1, 1]} : vector<2x128xf32> to vector<2x32xf32>
    %142 = math.tanh %141 : vector<2x32xf32>
    %143 = vector.extract_strided_slice %128 {offsets = [0, 96], sizes = [2, 32], strides = [1, 1]} : vector<2x128xf32> to vector<2x32xf32>
    %144 = arith.negf %143 : vector<2x32xf32>
    %145 = math.exp %144 : vector<2x32xf32>
    %cst_28 = arith.constant 1.000000e+00 : f32
    %146 = vector.broadcast %cst_28 : f32 to vector<2x32xf32>
    %147 = arith.addf %146, %145 : vector<2x32xf32>
    %148 = arith.divf %146, %147 : vector<2x32xf32>
    %149 = arith.mulf %140, %92 : vector<2x32xf32>
    %150 = arith.mulf %134, %142 : vector<2x32xf32>
    %151 = arith.addf %149, %150 : vector<2x32xf32>
    %152 = math.tanh %151 : vector<2x32xf32>
    %153 = arith.mulf %148, %152 : vector<2x32xf32>
    %154 = tpu.concatenate %123, %153 in 1 : vector<2x32xf32>, vector<2x32xf32> -> vector<2x64xf32>
    %cst_29 = arith.constant dense<0.000000e+00> : vector<2x128xf32>
    %155 = tpu.matmul %154, %2, %cst_29 {dimension_numbers = #tpu.dot_dimension_numbers<[1], [0], [0], [1], [0, 0, 1, 1], [], []>} : vector<2x64xf32>, vector<64x128xf32>, vector<2x128xf32> -> vector<2x128xf32>
    %156 = vector.broadcast %4 : vector<1x128xf32> to vector<2x128xf32>
    %157 = arith.addf %155, %156 : vector<2x128xf32>
    %158 = vector.extract_strided_slice %157 {offsets = [0, 0], sizes = [2, 32], strides = [1, 1]} : vector<2x128xf32> to vector<2x32xf32>
    %159 = arith.negf %158 : vector<2x32xf32>
    %160 = math.exp %159 : vector<2x32xf32>
    %cst_30 = arith.constant 1.000000e+00 : f32
    %161 = vector.broadcast %cst_30 : f32 to vector<2x32xf32>
    %162 = arith.addf %161, %160 : vector<2x32xf32>
    %163 = arith.divf %161, %162 : vector<2x32xf32>
    %164 = vector.extract_strided_slice %157 {offsets = [0, 32], sizes = [2, 32], strides = [1, 1]} : vector<2x128xf32> to vector<2x32xf32>
    %165 = arith.negf %164 : vector<2x32xf32>
    %166 = math.exp %165 : vector<2x32xf32>
    %cst_31 = arith.constant 1.000000e+00 : f32
    %167 = vector.broadcast %cst_31 : f32 to vector<2x32xf32>
    %168 = arith.addf %167, %166 : vector<2x32xf32>
    %169 = arith.divf %167, %168 : vector<2x32xf32>
    %170 = vector.extract_strided_slice %157 {offsets = [0, 64], sizes = [2, 32], strides = [1, 1]} : vector<2x128xf32> to vector<2x32xf32>
    %171 = math.tanh %170 : vector<2x32xf32>
    %172 = vector.extract_strided_slice %157 {offsets = [0, 96], sizes = [2, 32], strides = [1, 1]} : vector<2x128xf32> to vector<2x32xf32>
    %173 = arith.negf %172 : vector<2x32xf32>
    %174 = math.exp %173 : vector<2x32xf32>
    %cst_32 = arith.constant 1.000000e+00 : f32
    %175 = vector.broadcast %cst_32 : f32 to vector<2x32xf32>
    %176 = arith.addf %175, %174 : vector<2x32xf32>
    %177 = arith.divf %175, %176 : vector<2x32xf32>
    %178 = arith.mulf %169, %121 : vector<2x32xf32>
    %179 = arith.mulf %163, %171 : vector<2x32xf32>
    %180 = arith.addf %178, %179 : vector<2x32xf32>
    %181 = math.tanh %180 : vector<2x32xf32>
    %182 = arith.mulf %177, %181 : vector<2x32xf32>
    %183 = vector.extract_strided_slice %0 {offsets = [0, 24], sizes = [2, 8], strides = [1, 1]} : vector<2x64xf32> to vector<2x8xf32>
    %184 = tpu.concatenate %153, %183 in 1 : vector<2x32xf32>, vector<2x8xf32> -> vector<2x40xf32>
    %cst_33 = arith.constant dense<0.000000e+00> : vector<2x128xf32>
    %185 = tpu.matmul %184, %1, %cst_33 {dimension_numbers = #tpu.dot_dimension_numbers<[1], [0], [0], [1], [0, 0, 1, 1], [], []>} : vector<2x40xf32>, vector<40x128xf32>, vector<2x128xf32> -> vector<2x128xf32>
    %186 = vector.broadcast %3 : vector<1x128xf32> to vector<2x128xf32>
    %187 = arith.addf %185, %186 : vector<2x128xf32>
    %188 = vector.extract_strided_slice %187 {offsets = [0, 0], sizes = [2, 32], strides = [1, 1]} : vector<2x128xf32> to vector<2x32xf32>
    %189 = arith.negf %188 : vector<2x32xf32>
    %190 = math.exp %189 : vector<2x32xf32>
    %cst_34 = arith.constant 1.000000e+00 : f32
    %191 = vector.broadcast %cst_34 : f32 to vector<2x32xf32>
    %192 = arith.addf %191, %190 : vector<2x32xf32>
    %193 = arith.divf %191, %192 : vector<2x32xf32>
    %194 = vector.extract_strided_slice %187 {offsets = [0, 32], sizes = [2, 32], strides = [1, 1]} : vector<2x128xf32> to vector<2x32xf32>
    %195 = arith.negf %194 : vector<2x32xf32>
    %196 = math.exp %195 : vector<2x32xf32>
    %cst_35 = arith.constant 1.000000e+00 : f32
    %197 = vector.broadcast %cst_35 : f32 to vector<2x32xf32>
    %198 = arith.addf %197, %196 : vector<2x32xf32>
    %199 = arith.divf %197, %198 : vector<2x32xf32>
    %200 = vector.extract_strided_slice %187 {offsets = [0, 64], sizes = [2, 32], strides = [1, 1]} : vector<2x128xf32> to vector<2x32xf32>
    %201 = math.tanh %200 : vector<2x32xf32>
    %202 = vector.extract_strided_slice %187 {offsets = [0, 96], sizes = [2, 32], strides = [1, 1]} : vector<2x128xf32> to vector<2x32xf32>
    %203 = arith.negf %202 : vector<2x32xf32>
    %204 = math.exp %203 : vector<2x32xf32>
    %cst_36 = arith.constant 1.000000e+00 : f32
    %205 = vector.broadcast %cst_36 : f32 to vector<2x32xf32>
    %206 = arith.addf %205, %204 : vector<2x32xf32>
    %207 = arith.divf %205, %206 : vector<2x32xf32>
    %208 = arith.mulf %199, %151 : vector<2x32xf32>
    %209 = arith.mulf %193, %201 : vector<2x32xf32>
    %210 = arith.addf %208, %209 : vector<2x32xf32>
    %211 = math.tanh %210 : vector<2x32xf32>
    %212 = arith.mulf %207, %211 : vector<2x32xf32>
    %213 = tpu.concatenate %182, %212 in 1 : vector<2x32xf32>, vector<2x32xf32> -> vector<2x64xf32>
    %cst_37 = arith.constant dense<0.000000e+00> : vector<2x128xf32>
    %214 = tpu.matmul %213, %2, %cst_37 {dimension_numbers = #tpu.dot_dimension_numbers<[1], [0], [0], [1], [0, 0, 1, 1], [], []>} : vector<2x64xf32>, vector<64x128xf32>, vector<2x128xf32> -> vector<2x128xf32>
    %215 = vector.broadcast %4 : vector<1x128xf32> to vector<2x128xf32>
    %216 = arith.addf %214, %215 : vector<2x128xf32>
    %217 = vector.extract_strided_slice %216 {offsets = [0, 0], sizes = [2, 32], strides = [1, 1]} : vector<2x128xf32> to vector<2x32xf32>
    %218 = arith.negf %217 : vector<2x32xf32>
    %219 = math.exp %218 : vector<2x32xf32>
    %cst_38 = arith.constant 1.000000e+00 : f32
    %220 = vector.broadcast %cst_38 : f32 to vector<2x32xf32>
    %221 = arith.addf %220, %219 : vector<2x32xf32>
    %222 = arith.divf %220, %221 : vector<2x32xf32>
    %223 = vector.extract_strided_slice %216 {offsets = [0, 32], sizes = [2, 32], strides = [1, 1]} : vector<2x128xf32> to vector<2x32xf32>
    %224 = arith.negf %223 : vector<2x32xf32>
    %225 = math.exp %224 : vector<2x32xf32>
    %cst_39 = arith.constant 1.000000e+00 : f32
    %226 = vector.broadcast %cst_39 : f32 to vector<2x32xf32>
    %227 = arith.addf %226, %225 : vector<2x32xf32>
    %228 = arith.divf %226, %227 : vector<2x32xf32>
    %229 = vector.extract_strided_slice %216 {offsets = [0, 64], sizes = [2, 32], strides = [1, 1]} : vector<2x128xf32> to vector<2x32xf32>
    %230 = math.tanh %229 : vector<2x32xf32>
    %231 = vector.extract_strided_slice %216 {offsets = [0, 96], sizes = [2, 32], strides = [1, 1]} : vector<2x128xf32> to vector<2x32xf32>
    %232 = arith.negf %231 : vector<2x32xf32>
    %233 = math.exp %232 : vector<2x32xf32>
    %cst_40 = arith.constant 1.000000e+00 : f32
    %234 = vector.broadcast %cst_40 : f32 to vector<2x32xf32>
    %235 = arith.addf %234, %233 : vector<2x32xf32>
    %236 = arith.divf %234, %235 : vector<2x32xf32>
    %237 = arith.mulf %228, %180 : vector<2x32xf32>
    %238 = arith.mulf %222, %230 : vector<2x32xf32>
    %239 = arith.addf %237, %238 : vector<2x32xf32>
    %240 = math.tanh %239 : vector<2x32xf32>
    %241 = arith.mulf %236, %240 : vector<2x32xf32>
    %242 = vector.extract_strided_slice %0 {offsets = [0, 32], sizes = [2, 8], strides = [1, 1]} : vector<2x64xf32> to vector<2x8xf32>
    %243 = tpu.concatenate %212, %242 in 1 : vector<2x32xf32>, vector<2x8xf32> -> vector<2x40xf32>
    %cst_41 = arith.constant dense<0.000000e+00> : vector<2x128xf32>
    %244 = tpu.matmul %243, %1, %cst_41 {dimension_numbers = #tpu.dot_dimension_numbers<[1], [0], [0], [1], [0, 0, 1, 1], [], []>} : vector<2x40xf32>, vector<40x128xf32>, vector<2x128xf32> -> vector<2x128xf32>
    %245 = vector.broadcast %3 : vector<1x128xf32> to vector<2x128xf32>
    %246 = arith.addf %244, %245 : vector<2x128xf32>
    %247 = vector.extract_strided_slice %246 {offsets = [0, 0], sizes = [2, 32], strides = [1, 1]} : vector<2x128xf32> to vector<2x32xf32>
    %248 = arith.negf %247 : vector<2x32xf32>
    %249 = math.exp %248 : vector<2x32xf32>
    %cst_42 = arith.constant 1.000000e+00 : f32
    %250 = vector.broadcast %cst_42 : f32 to vector<2x32xf32>
    %251 = arith.addf %250, %249 : vector<2x32xf32>
    %252 = arith.divf %250, %251 : vector<2x32xf32>
    %253 = vector.extract_strided_slice %246 {offsets = [0, 32], sizes = [2, 32], strides = [1, 1]} : vector<2x128xf32> to vector<2x32xf32>
    %254 = arith.negf %253 : vector<2x32xf32>
    %255 = math.exp %254 : vector<2x32xf32>
    %cst_43 = arith.constant 1.000000e+00 : f32
    %256 = vector.broadcast %cst_43 : f32 to vector<2x32xf32>
    %257 = arith.addf %256, %255 : vector<2x32xf32>
    %258 = arith.divf %256, %257 : vector<2x32xf32>
    %259 = vector.extract_strided_slice %246 {offsets = [0, 64], sizes = [2, 32], strides = [1, 1]} : vector<2x128xf32> to vector<2x32xf32>
    %260 = math.tanh %259 : vector<2x32xf32>
    %261 = vector.extract_strided_slice %246 {offsets = [0, 96], sizes = [2, 32], strides = [1, 1]} : vector<2x128xf32> to vector<2x32xf32>
    %262 = arith.negf %261 : vector<2x32xf32>
    %263 = math.exp %262 : vector<2x32xf32>
    %cst_44 = arith.constant 1.000000e+00 : f32
    %264 = vector.broadcast %cst_44 : f32 to vector<2x32xf32>
    %265 = arith.addf %264, %263 : vector<2x32xf32>
    %266 = arith.divf %264, %265 : vector<2x32xf32>
    %267 = arith.mulf %258, %210 : vector<2x32xf32>
    %268 = arith.mulf %252, %260 : vector<2x32xf32>
    %269 = arith.addf %267, %268 : vector<2x32xf32>
    %270 = math.tanh %269 : vector<2x32xf32>
    %271 = arith.mulf %266, %270 : vector<2x32xf32>
    %272 = tpu.concatenate %241, %271 in 1 : vector<2x32xf32>, vector<2x32xf32> -> vector<2x64xf32>
    %cst_45 = arith.constant dense<0.000000e+00> : vector<2x128xf32>
    %273 = tpu.matmul %272, %2, %cst_45 {dimension_numbers = #tpu.dot_dimension_numbers<[1], [0], [0], [1], [0, 0, 1, 1], [], []>} : vector<2x64xf32>, vector<64x128xf32>, vector<2x128xf32> -> vector<2x128xf32>
    %274 = vector.broadcast %4 : vector<1x128xf32> to vector<2x128xf32>
    %275 = arith.addf %273, %274 : vector<2x128xf32>
    %276 = vector.extract_strided_slice %275 {offsets = [0, 0], sizes = [2, 32], strides = [1, 1]} : vector<2x128xf32> to vector<2x32xf32>
    %277 = arith.negf %276 : vector<2x32xf32>
    %278 = math.exp %277 : vector<2x32xf32>
    %cst_46 = arith.constant 1.000000e+00 : f32
    %279 = vector.broadcast %cst_46 : f32 to vector<2x32xf32>
    %280 = arith.addf %279, %278 : vector<2x32xf32>
    %281 = arith.divf %279, %280 : vector<2x32xf32>
    %282 = vector.extract_strided_slice %275 {offsets = [0, 32], sizes = [2, 32], strides = [1, 1]} : vector<2x128xf32> to vector<2x32xf32>
    %283 = arith.negf %282 : vector<2x32xf32>
    %284 = math.exp %283 : vector<2x32xf32>
    %cst_47 = arith.constant 1.000000e+00 : f32
    %285 = vector.broadcast %cst_47 : f32 to vector<2x32xf32>
    %286 = arith.addf %285, %284 : vector<2x32xf32>
    %287 = arith.divf %285, %286 : vector<2x32xf32>
    %288 = vector.extract_strided_slice %275 {offsets = [0, 64], sizes = [2, 32], strides = [1, 1]} : vector<2x128xf32> to vector<2x32xf32>
    %289 = math.tanh %288 : vector<2x32xf32>
    %290 = vector.extract_strided_slice %275 {offsets = [0, 96], sizes = [2, 32], strides = [1, 1]} : vector<2x128xf32> to vector<2x32xf32>
    %291 = arith.negf %290 : vector<2x32xf32>
    %292 = math.exp %291 : vector<2x32xf32>
    %cst_48 = arith.constant 1.000000e+00 : f32
    %293 = vector.broadcast %cst_48 : f32 to vector<2x32xf32>
    %294 = arith.addf %293, %292 : vector<2x32xf32>
    %295 = arith.divf %293, %294 : vector<2x32xf32>
    %296 = arith.mulf %287, %239 : vector<2x32xf32>
    %297 = arith.mulf %281, %289 : vector<2x32xf32>
    %298 = arith.addf %296, %297 : vector<2x32xf32>
    %299 = math.tanh %298 : vector<2x32xf32>
    %300 = arith.mulf %295, %299 : vector<2x32xf32>
    %301 = vector.extract_strided_slice %0 {offsets = [0, 40], sizes = [2, 8], strides = [1, 1]} : vector<2x64xf32> to vector<2x8xf32>
    %302 = tpu.concatenate %271, %301 in 1 : vector<2x32xf32>, vector<2x8xf32> -> vector<2x40xf32>
    %cst_49 = arith.constant dense<0.000000e+00> : vector<2x128xf32>
    %303 = tpu.matmul %302, %1, %cst_49 {dimension_numbers = #tpu.dot_dimension_numbers<[1], [0], [0], [1], [0, 0, 1, 1], [], []>} : vector<2x40xf32>, vector<40x128xf32>, vector<2x128xf32> -> vector<2x128xf32>
    %304 = vector.broadcast %3 : vector<1x128xf32> to vector<2x128xf32>
    %305 = arith.addf %303, %304 : vector<2x128xf32>
    %306 = vector.extract_strided_slice %305 {offsets = [0, 0], sizes = [2, 32], strides = [1, 1]} : vector<2x128xf32> to vector<2x32xf32>
    %307 = arith.negf %306 : vector<2x32xf32>
    %308 = math.exp %307 : vector<2x32xf32>
    %cst_50 = arith.constant 1.000000e+00 : f32
    %309 = vector.broadcast %cst_50 : f32 to vector<2x32xf32>
    %310 = arith.addf %309, %308 : vector<2x32xf32>
    %311 = arith.divf %309, %310 : vector<2x32xf32>
    %312 = vector.extract_strided_slice %305 {offsets = [0, 32], sizes = [2, 32], strides = [1, 1]} : vector<2x128xf32> to vector<2x32xf32>
    %313 = arith.negf %312 : vector<2x32xf32>
    %314 = math.exp %313 : vector<2x32xf32>
    %cst_51 = arith.constant 1.000000e+00 : f32
    %315 = vector.broadcast %cst_51 : f32 to vector<2x32xf32>
    %316 = arith.addf %315, %314 : vector<2x32xf32>
    %317 = arith.divf %315, %316 : vector<2x32xf32>
    %318 = vector.extract_strided_slice %305 {offsets = [0, 64], sizes = [2, 32], strides = [1, 1]} : vector<2x128xf32> to vector<2x32xf32>
    %319 = math.tanh %318 : vector<2x32xf32>
    %320 = vector.extract_strided_slice %305 {offsets = [0, 96], sizes = [2, 32], strides = [1, 1]} : vector<2x128xf32> to vector<2x32xf32>
    %321 = arith.negf %320 : vector<2x32xf32>
    %322 = math.exp %321 : vector<2x32xf32>
    %cst_52 = arith.constant 1.000000e+00 : f32
    %323 = vector.broadcast %cst_52 : f32 to vector<2x32xf32>
    %324 = arith.addf %323, %322 : vector<2x32xf32>
    %325 = arith.divf %323, %324 : vector<2x32xf32>
    %326 = arith.mulf %317, %269 : vector<2x32xf32>
    %327 = arith.mulf %311, %319 : vector<2x32xf32>
    %328 = arith.addf %326, %327 : vector<2x32xf32>
    %329 = math.tanh %328 : vector<2x32xf32>
    %330 = arith.mulf %325, %329 : vector<2x32xf32>
    %331 = tpu.concatenate %300, %330 in 1 : vector<2x32xf32>, vector<2x32xf32> -> vector<2x64xf32>
    %cst_53 = arith.constant dense<0.000000e+00> : vector<2x128xf32>
    %332 = tpu.matmul %331, %2, %cst_53 {dimension_numbers = #tpu.dot_dimension_numbers<[1], [0], [0], [1], [0, 0, 1, 1], [], []>} : vector<2x64xf32>, vector<64x128xf32>, vector<2x128xf32> -> vector<2x128xf32>
    %333 = vector.broadcast %4 : vector<1x128xf32> to vector<2x128xf32>
    %334 = arith.addf %332, %333 : vector<2x128xf32>
    %335 = vector.extract_strided_slice %334 {offsets = [0, 0], sizes = [2, 32], strides = [1, 1]} : vector<2x128xf32> to vector<2x32xf32>
    %336 = arith.negf %335 : vector<2x32xf32>
    %337 = math.exp %336 : vector<2x32xf32>
    %cst_54 = arith.constant 1.000000e+00 : f32
    %338 = vector.broadcast %cst_54 : f32 to vector<2x32xf32>
    %339 = arith.addf %338, %337 : vector<2x32xf32>
    %340 = arith.divf %338, %339 : vector<2x32xf32>
    %341 = vector.extract_strided_slice %334 {offsets = [0, 32], sizes = [2, 32], strides = [1, 1]} : vector<2x128xf32> to vector<2x32xf32>
    %342 = arith.negf %341 : vector<2x32xf32>
    %343 = math.exp %342 : vector<2x32xf32>
    %cst_55 = arith.constant 1.000000e+00 : f32
    %344 = vector.broadcast %cst_55 : f32 to vector<2x32xf32>
    %345 = arith.addf %344, %343 : vector<2x32xf32>
    %346 = arith.divf %344, %345 : vector<2x32xf32>
    %347 = vector.extract_strided_slice %334 {offsets = [0, 64], sizes = [2, 32], strides = [1, 1]} : vector<2x128xf32> to vector<2x32xf32>
    %348 = math.tanh %347 : vector<2x32xf32>
    %349 = vector.extract_strided_slice %334 {offsets = [0, 96], sizes = [2, 32], strides = [1, 1]} : vector<2x128xf32> to vector<2x32xf32>
    %350 = arith.negf %349 : vector<2x32xf32>
    %351 = math.exp %350 : vector<2x32xf32>
    %cst_56 = arith.constant 1.000000e+00 : f32
    %352 = vector.broadcast %cst_56 : f32 to vector<2x32xf32>
    %353 = arith.addf %352, %351 : vector<2x32xf32>
    %354 = arith.divf %352, %353 : vector<2x32xf32>
    %355 = arith.mulf %346, %298 : vector<2x32xf32>
    %356 = arith.mulf %340, %348 : vector<2x32xf32>
    %357 = arith.addf %355, %356 : vector<2x32xf32>
    %358 = math.tanh %357 : vector<2x32xf32>
    %359 = arith.mulf %354, %358 : vector<2x32xf32>
    %360 = vector.extract_strided_slice %0 {offsets = [0, 48], sizes = [2, 8], strides = [1, 1]} : vector<2x64xf32> to vector<2x8xf32>
    %361 = tpu.concatenate %330, %360 in 1 : vector<2x32xf32>, vector<2x8xf32> -> vector<2x40xf32>
    %cst_57 = arith.constant dense<0.000000e+00> : vector<2x128xf32>
    %362 = tpu.matmul %361, %1, %cst_57 {dimension_numbers = #tpu.dot_dimension_numbers<[1], [0], [0], [1], [0, 0, 1, 1], [], []>} : vector<2x40xf32>, vector<40x128xf32>, vector<2x128xf32> -> vector<2x128xf32>
    %363 = vector.broadcast %3 : vector<1x128xf32> to vector<2x128xf32>
    %364 = arith.addf %362, %363 : vector<2x128xf32>
    %365 = vector.extract_strided_slice %364 {offsets = [0, 0], sizes = [2, 32], strides = [1, 1]} : vector<2x128xf32> to vector<2x32xf32>
    %366 = arith.negf %365 : vector<2x32xf32>
    %367 = math.exp %366 : vector<2x32xf32>
    %cst_58 = arith.constant 1.000000e+00 : f32
    %368 = vector.broadcast %cst_58 : f32 to vector<2x32xf32>
    %369 = arith.addf %368, %367 : vector<2x32xf32>
    %370 = arith.divf %368, %369 : vector<2x32xf32>
    %371 = vector.extract_strided_slice %364 {offsets = [0, 32], sizes = [2, 32], strides = [1, 1]} : vector<2x128xf32> to vector<2x32xf32>
    %372 = arith.negf %371 : vector<2x32xf32>
    %373 = math.exp %372 : vector<2x32xf32>
    %cst_59 = arith.constant 1.000000e+00 : f32
    %374 = vector.broadcast %cst_59 : f32 to vector<2x32xf32>
    %375 = arith.addf %374, %373 : vector<2x32xf32>
    %376 = arith.divf %374, %375 : vector<2x32xf32>
    %377 = vector.extract_strided_slice %364 {offsets = [0, 64], sizes = [2, 32], strides = [1, 1]} : vector<2x128xf32> to vector<2x32xf32>
    %378 = math.tanh %377 : vector<2x32xf32>
    %379 = vector.extract_strided_slice %364 {offsets = [0, 96], sizes = [2, 32], strides = [1, 1]} : vector<2x128xf32> to vector<2x32xf32>
    %380 = arith.negf %379 : vector<2x32xf32>
    %381 = math.exp %380 : vector<2x32xf32>
    %cst_60 = arith.constant 1.000000e+00 : f32
    %382 = vector.broadcast %cst_60 : f32 to vector<2x32xf32>
    %383 = arith.addf %382, %381 : vector<2x32xf32>
    %384 = arith.divf %382, %383 : vector<2x32xf32>
    %385 = arith.mulf %376, %328 : vector<2x32xf32>
    %386 = arith.mulf %370, %378 : vector<2x32xf32>
    %387 = arith.addf %385, %386 : vector<2x32xf32>
    %388 = math.tanh %387 : vector<2x32xf32>
    %389 = arith.mulf %384, %388 : vector<2x32xf32>
    %390 = tpu.concatenate %359, %389 in 1 : vector<2x32xf32>, vector<2x32xf32> -> vector<2x64xf32>
    %cst_61 = arith.constant dense<0.000000e+00> : vector<2x128xf32>
    %391 = tpu.matmul %390, %2, %cst_61 {dimension_numbers = #tpu.dot_dimension_numbers<[1], [0], [0], [1], [0, 0, 1, 1], [], []>} : vector<2x64xf32>, vector<64x128xf32>, vector<2x128xf32> -> vector<2x128xf32>
    %392 = vector.broadcast %4 : vector<1x128xf32> to vector<2x128xf32>
    %393 = arith.addf %391, %392 : vector<2x128xf32>
    %394 = vector.extract_strided_slice %393 {offsets = [0, 0], sizes = [2, 32], strides = [1, 1]} : vector<2x128xf32> to vector<2x32xf32>
    %395 = arith.negf %394 : vector<2x32xf32>
    %396 = math.exp %395 : vector<2x32xf32>
    %cst_62 = arith.constant 1.000000e+00 : f32
    %397 = vector.broadcast %cst_62 : f32 to vector<2x32xf32>
    %398 = arith.addf %397, %396 : vector<2x32xf32>
    %399 = arith.divf %397, %398 : vector<2x32xf32>
    %400 = vector.extract_strided_slice %393 {offsets = [0, 32], sizes = [2, 32], strides = [1, 1]} : vector<2x128xf32> to vector<2x32xf32>
    %401 = arith.negf %400 : vector<2x32xf32>
    %402 = math.exp %401 : vector<2x32xf32>
    %cst_63 = arith.constant 1.000000e+00 : f32
    %403 = vector.broadcast %cst_63 : f32 to vector<2x32xf32>
    %404 = arith.addf %403, %402 : vector<2x32xf32>
    %405 = arith.divf %403, %404 : vector<2x32xf32>
    %406 = vector.extract_strided_slice %393 {offsets = [0, 64], sizes = [2, 32], strides = [1, 1]} : vector<2x128xf32> to vector<2x32xf32>
    %407 = math.tanh %406 : vector<2x32xf32>
    %408 = vector.extract_strided_slice %393 {offsets = [0, 96], sizes = [2, 32], strides = [1, 1]} : vector<2x128xf32> to vector<2x32xf32>
    %409 = arith.negf %408 : vector<2x32xf32>
    %410 = math.exp %409 : vector<2x32xf32>
    %cst_64 = arith.constant 1.000000e+00 : f32
    %411 = vector.broadcast %cst_64 : f32 to vector<2x32xf32>
    %412 = arith.addf %411, %410 : vector<2x32xf32>
    %413 = arith.divf %411, %412 : vector<2x32xf32>
    %414 = arith.mulf %405, %357 : vector<2x32xf32>
    %415 = arith.mulf %399, %407 : vector<2x32xf32>
    %416 = arith.addf %414, %415 : vector<2x32xf32>
    %417 = math.tanh %416 : vector<2x32xf32>
    %418 = arith.mulf %413, %417 : vector<2x32xf32>
    %419 = vector.extract_strided_slice %0 {offsets = [0, 56], sizes = [2, 8], strides = [1, 1]} : vector<2x64xf32> to vector<2x8xf32>
    %420 = tpu.concatenate %389, %419 in 1 : vector<2x32xf32>, vector<2x8xf32> -> vector<2x40xf32>
    %cst_65 = arith.constant dense<0.000000e+00> : vector<2x128xf32>
    %421 = tpu.matmul %420, %1, %cst_65 {dimension_numbers = #tpu.dot_dimension_numbers<[1], [0], [0], [1], [0, 0, 1, 1], [], []>} : vector<2x40xf32>, vector<40x128xf32>, vector<2x128xf32> -> vector<2x128xf32>
    %422 = vector.broadcast %3 : vector<1x128xf32> to vector<2x128xf32>
    %423 = arith.addf %421, %422 : vector<2x128xf32>
    %424 = vector.extract_strided_slice %423 {offsets = [0, 0], sizes = [2, 32], strides = [1, 1]} : vector<2x128xf32> to vector<2x32xf32>
    %425 = arith.negf %424 : vector<2x32xf32>
    %426 = math.exp %425 : vector<2x32xf32>
    %cst_66 = arith.constant 1.000000e+00 : f32
    %427 = vector.broadcast %cst_66 : f32 to vector<2x32xf32>
    %428 = arith.addf %427, %426 : vector<2x32xf32>
    %429 = arith.divf %427, %428 : vector<2x32xf32>
    %430 = vector.extract_strided_slice %423 {offsets = [0, 32], sizes = [2, 32], strides = [1, 1]} : vector<2x128xf32> to vector<2x32xf32>
    %431 = arith.negf %430 : vector<2x32xf32>
    %432 = math.exp %431 : vector<2x32xf32>
    %cst_67 = arith.constant 1.000000e+00 : f32
    %433 = vector.broadcast %cst_67 : f32 to vector<2x32xf32>
    %434 = arith.addf %433, %432 : vector<2x32xf32>
    %435 = arith.divf %433, %434 : vector<2x32xf32>
    %436 = vector.extract_strided_slice %423 {offsets = [0, 64], sizes = [2, 32], strides = [1, 1]} : vector<2x128xf32> to vector<2x32xf32>
    %437 = math.tanh %436 : vector<2x32xf32>
    %438 = vector.extract_strided_slice %423 {offsets = [0, 96], sizes = [2, 32], strides = [1, 1]} : vector<2x128xf32> to vector<2x32xf32>
    %439 = arith.negf %438 : vector<2x32xf32>
    %440 = math.exp %439 : vector<2x32xf32>
    %cst_68 = arith.constant 1.000000e+00 : f32
    %441 = vector.broadcast %cst_68 : f32 to vector<2x32xf32>
    %442 = arith.addf %441, %440 : vector<2x32xf32>
    %443 = arith.divf %441, %442 : vector<2x32xf32>
    %444 = arith.mulf %435, %387 : vector<2x32xf32>
    %445 = arith.mulf %429, %437 : vector<2x32xf32>
    %446 = arith.addf %444, %445 : vector<2x32xf32>
    %447 = math.tanh %446 : vector<2x32xf32>
    %448 = arith.mulf %443, %447 : vector<2x32xf32>
    %449 = tpu.concatenate %418, %448 in 1 : vector<2x32xf32>, vector<2x32xf32> -> vector<2x64xf32>
    %cst_69 = arith.constant dense<0.000000e+00> : vector<2x128xf32>
    %450 = tpu.matmul %449, %2, %cst_69 {dimension_numbers = #tpu.dot_dimension_numbers<[1], [0], [0], [1], [0, 0, 1, 1], [], []>} : vector<2x64xf32>, vector<64x128xf32>, vector<2x128xf32> -> vector<2x128xf32>
    %451 = vector.broadcast %4 : vector<1x128xf32> to vector<2x128xf32>
    %452 = arith.addf %450, %451 : vector<2x128xf32>
    %453 = vector.extract_strided_slice %452 {offsets = [0, 0], sizes = [2, 32], strides = [1, 1]} : vector<2x128xf32> to vector<2x32xf32>
    %454 = arith.negf %453 : vector<2x32xf32>
    %455 = math.exp %454 : vector<2x32xf32>
    %cst_70 = arith.constant 1.000000e+00 : f32
    %456 = vector.broadcast %cst_70 : f32 to vector<2x32xf32>
    %457 = arith.addf %456, %455 : vector<2x32xf32>
    %458 = arith.divf %456, %457 : vector<2x32xf32>
    %459 = vector.extract_strided_slice %452 {offsets = [0, 32], sizes = [2, 32], strides = [1, 1]} : vector<2x128xf32> to vector<2x32xf32>
    %460 = arith.negf %459 : vector<2x32xf32>
    %461 = math.exp %460 : vector<2x32xf32>
    %cst_71 = arith.constant 1.000000e+00 : f32
    %462 = vector.broadcast %cst_71 : f32 to vector<2x32xf32>
    %463 = arith.addf %462, %461 : vector<2x32xf32>
    %464 = arith.divf %462, %463 : vector<2x32xf32>
    %465 = vector.extract_strided_slice %452 {offsets = [0, 64], sizes = [2, 32], strides = [1, 1]} : vector<2x128xf32> to vector<2x32xf32>
    %466 = math.tanh %465 : vector<2x32xf32>
    %467 = vector.extract_strided_slice %452 {offsets = [0, 96], sizes = [2, 32], strides = [1, 1]} : vector<2x128xf32> to vector<2x32xf32>
    %468 = arith.negf %467 : vector<2x32xf32>
    %469 = math.exp %468 : vector<2x32xf32>
    %cst_72 = arith.constant 1.000000e+00 : f32
    %470 = vector.broadcast %cst_72 : f32 to vector<2x32xf32>
    %471 = arith.addf %470, %469 : vector<2x32xf32>
    %472 = arith.divf %470, %471 : vector<2x32xf32>
    %473 = arith.mulf %464, %416 : vector<2x32xf32>
    %474 = arith.mulf %458, %466 : vector<2x32xf32>
    %475 = arith.addf %473, %474 : vector<2x32xf32>
    %476 = math.tanh %475 : vector<2x32xf32>
    %477 = arith.mulf %472, %476 : vector<2x32xf32>
    %c0_73 = arith.constant 0 : index
    %c0_74 = arith.constant 0 : index
    %478 = vector.load %arg5[%c0_73, %c0_74] : memref<32x12xf32, #tpu.memory_space<vmem>>, vector<32x12xf32>
    %cst_75 = arith.constant dense<0.000000e+00> : vector<2x12xf32>
    %479 = tpu.matmul %477, %478, %cst_75 {dimension_numbers = #tpu.dot_dimension_numbers<[1], [0], [0], [1], [0, 0, 1, 1], [], []>} : vector<2x32xf32>, vector<32x12xf32>, vector<2x12xf32> -> vector<2x12xf32>
    %c0_76 = arith.constant 0 : index
    %c0_77 = arith.constant 0 : index
    %480 = vector.load %arg6[%c0_76, %c0_77] : memref<1x12xf32, #tpu.memory_space<vmem>>, vector<1x12xf32>
    %481 = vector.broadcast %480 : vector<1x12xf32> to vector<2x12xf32>
    %482 = arith.addf %479, %481 : vector<2x12xf32>
    %c0_78 = arith.constant 0 : index
    %c0_79 = arith.constant 0 : index
    %483 = vector.load %arg7[%c0_78, %c0_79] : memref<2x12xf32, #tpu.memory_space<vmem>>, vector<2x12xf32>
    tpu.vector_store %arg7[%c0_78, %c0_79], %482 {strides = array<i32>} : memref<2x12xf32, #tpu.memory_space<vmem>>, vector<2x12xf32>,
    return
  }
}

</mosaic_0001>

<llo_original>
// kernel: lstm_ball_forward.1
$region0: #{lstm_ball_forward.1}
  #allocation0 [shape = 'u32[]', space=smem, size = 0x4, offset = 0x4, fixed_abs, tag = 'smem constant byte address 0x4 - core index']
  #allocation1 [shape = 'u32[144,128]{1,0:T(1,128)}', space=vmem, size = 0x12000, scoped, tag = 'internal scratch']
  %s0 = inlined_call_operand.vmem [shape: f32[2,64], index: 0, kind: input, shape index: {}]
  %s1 = inlined_call_operand.hbm [shape: f32[40,128], index: 1, kind: input, shape index: {}]
  %s2 = inlined_call_operand.vmem [shape: f32[1,128], index: 2, kind: input, shape index: {}]
  %s3 = inlined_call_operand.vmem [shape: f32[64,128], index: 3, kind: input, shape index: {}]
  %s4 = inlined_call_operand.vmem [shape: f32[1,128], index: 4, kind: input, shape index: {}]
  %s5 = inlined_call_operand.vmem [shape: f32[32,12], index: 5, kind: input, shape index: {}]
  %s6 = inlined_call_operand.vmem [shape: f32[1,12], index: 6, kind: input, shape index: {}]
  %s7 = inlined_call_operand.hbm [shape: f32[2,12], index: 7, kind: output, shape index: {}]
  %s8 = sld [smem:[#allocation0]]
  $region42: #{lstm_ball_forward.1} parent=0
    _
  %s10 = ssub.s32 1, %s8
  %s11 = scalar_select 0, %s10, %s8
  $region1: #{lstm_ball_forward.1} parent=0
    #allocation2 [shape = 'u8[20480]{0}', space=vmem, size = 0x5000, scoped, tag = 'input window, operand 1, single buffered']
    #allocation3 [shape = 's32[1]{0}', space=sflag, size = 0x4, scoped, tag = 'scoped memory for lstm_ball_forward.1']
    #allocation4 [shape = 's32[1]{0}', space=sflag, size = 0x4, scoped, tag = 'scoped memory for lstm_ball_forward.1']
    #allocation5 [shape = 'u8[1024]{0}', space=vmem, size = 0x400, scoped, tag = 'output window, operand 0, single buffered']
    %12 = vsyncpa [#allocation3], 0
    %13 = vsyncpa [#allocation4], 0
    // Predicated region
    $region2: #{lstm_ball_forward.1} parent=1 // pred_check
      _
    $region3: #{lstm_ball_forward.1} parent=1 // pred_check_branch
      %15 = sbr.rel (0) target = $region5
    $region4: #{lstm_ball_forward.1} parent=1 // pred_region
      _
    $region5: #{lstm_ball_forward.1} parent=1 // pred_fallthru
      _
    // Predicated region
    $region6: #{lstm_ball_forward.1} parent=1 // pred_check
      _
    $region7: #{lstm_ball_forward.1} parent=1 // pred_check_branch
      %17 = sbr.rel (0) target = $region9
    $region8: #{lstm_ball_forward.1} parent=1 // pred_region
      %s19 = ssub.s32 640, 640
      %20 = vsyncadd [#allocation3], %s19
      %s21 = sshll.u32 [#allocation2], 4
      %s22 = int_to_ptr.vmem [resolvable:$true] %s21
      %27 = dma.hbm_to_vmem [thread:$0]  %s1, 640, %s22, [#allocation3], 128, 128, 8
    $region9: #{lstm_ball_forward.1} parent=1 // pred_fallthru
      _
    // Predicated region
    $region10: #{lstm_ball_forward.1} parent=1 // pred_check
      _
    $region11: #{lstm_ball_forward.1} parent=1 // pred_check_branch
      %29 = sbr.rel (0) target = $region13
    $region12: #{lstm_ball_forward.1} parent=1 // pred_region
      _
    $region13: #{lstm_ball_forward.1} parent=1 // pred_fallthru
      _
    // Predicated region
    $region14: #{lstm_ball_forward.1} parent=1 // pred_check
      _
    $region15: #{lstm_ball_forward.1} parent=1 // pred_check_branch
      %31 = sbr.rel (0) target = $region17
    $region16: #{lstm_ball_forward.1} parent=1 // pred_region
      _
    $region17: #{lstm_ball_forward.1} parent=1 // pred_fallthru
      _
    // Predicated region
    $region18: #{lstm_ball_forward.1} parent=1 // pred_check
      _
    $region19: #{lstm_ball_forward.1} parent=1 // pred_check_branch
      %33 = sbr.rel (0) target = $region21
    $region20: #{lstm_ball_forward.1} parent=1 // pred_region
      _
    $region21: #{lstm_ball_forward.1} parent=1 // pred_fallthru
      _
    // Predicated region
    $region22: #{lstm_ball_forward.1} parent=1 // pred_check
      _
    $region23: #{lstm_ball_forward.1} parent=1 // pred_check_branch
      %35 = sbr.rel (0) target = $region25
    $region24: #{lstm_ball_forward.1} parent=1 // pred_region
      _
    $region25: #{lstm_ball_forward.1} parent=1 // pred_fallthru
      _
    // Predicated region
    $region26: #{lstm_ball_forward.1} parent=1 // pred_check
      _
    $region27: #{lstm_ball_forward.1} parent=1 // pred_check_branch
      %37 = sbr.rel (0) target = $region29
    $region28: #{lstm_ball_forward.1} parent=1 // pred_region
      _
    $region29: #{lstm_ball_forward.1} parent=1 // pred_fallthru
      _
    // Predicated region
    $region30: #{lstm_ball_forward.1} parent=1 // pred_check
      _
    $region31: #{lstm_ball_forward.1} parent=1 // pred_check_branch
      %39 = sbr.rel (0) target = $region33
    $region32: #{lstm_ball_forward.1} parent=1 // pred_region
      %40 = dma.done [#allocation3], 640
    $region33: #{lstm_ball_forward.1} parent=1 // pred_fallthru
      _
    %v41 = vld [vmem:[%s0] sm:$0x3]
    %v42 = vld [vmem:[#allocation2] sm:$0xff]
    %v43 = vld [vmem:[#allocation2 + $0x8] sm:$0xff]
    %v44 = vld [vmem:[#allocation2 + $0x10] sm:$0xff]
    %v45 = vld [vmem:[#allocation2 + $0x18] sm:$0xff]
    %v46 = vld [vmem:[#allocation2 + $0x20] sm:$0xff]
    %v47 = vld [vmem:[%s3] sm:$0xff]
    %v48 = vld [vmem:[%s3 + $0x8] sm:$0xff]
    %v49 = vld [vmem:[%s3 + $0x10] sm:$0xff]
    %v50 = vld [vmem:[%s3 + $0x18] sm:$0xff]
    %v51 = vld [vmem:[%s3 + $0x20] sm:$0xff]
    %v52 = vld [vmem:[%s3 + $0x28] sm:$0xff]
    %v53 = vld [vmem:[%s3 + $0x30] sm:$0xff]
    %v54 = vld [vmem:[%s3 + $0x38] sm:$0xff]
    %v55 = vld [vmem:[%s2] sm:$0x1]
    %v56 = vld [vmem:[%s4] sm:$0x1]
    %58 = vrot.lane.b32.xlu0 %v41, 32
    %v59 = vpop.permute.xlu0 %58
    %vm61 = vcmask 261120
    %v62 = vsel %vm61, 0.0, %v59
    %v64 = vlaneseq
    %v65 = vshrl.u32 %v64, 7
    %v66 = vsub.s32 0, %v65
    %v67 = vrot.slane %v55, %v66
    %vm69 = vcmask 326656
    %v71 = vsel %vm69, %v62, 0
    %73 = vmatprep.subr.mxu0 0.0
    %74 = vmatpush1.msra.mxu0 0.0
    %75 = vmatprep.subr.mxu0 0.0
    %76 = vmatpush1.msra.mxu0 0.0
    %77 = vmatprep.subr.mxu0 0.0
    %78 = vmatpush1.msra.mxu0 0.0
    %79 = vmatprep.subr.mxu0 0.0
    %80 = vmatpush1.msra.mxu0 0.0
    %81 = vmatprep.subr.mxu0 0.0
    %82 = vmatpush1.msra.mxu0 0.0
    %83 = vmatprep.subr.mxu0 0.0
    %84 = vmatpush1.msra.mxu0 0.0
    %85 = vmatprep.subr.mxu0 0.0
    %86 = vmatpush1.msra.mxu0 0.0
    %87 = vmatprep.subr.mxu0 0.0
    %88 = vmatpush1.msra.mxu0 0.0
    %89 = vmatprep.subr.mxu0 0.0
    %90 = vmatpush1.msra.mxu0 0.0
    %91 = vmatprep.subr.mxu0 0.0
    %92 = vmatpush1.msra.mxu0 0.0
    %93 = vmatprep.subr.mxu0 0.0
    %94 = vmatpush1.msra.mxu0 0.0
    %95 = vmatprep.subr.mxu0 0.0
    %96 = vmatpush1.msra.mxu0 %v46
    %97 = vmatprep.subr.mxu0 0.0
    %98 = vmatpush1.msra.mxu0 %v45
    %99 = vmatprep.subr.mxu0 0.0
    %100 = vmatpush1.msra.mxu0 %v44
    %101 = vmatprep.subr.mxu0 0.0
    %102 = vmatpush1.msra.mxu0 %v43
    %103 = vmatprep.subr.mxu0 0.0
    %104 = vmatpush1.msra.mxu0 %v42
    %105 = vmatprep.subr.mxu0 0.0
    %106 = vmatpush2.msra.mxu0 0.0
    %107 = vmatprep.subr.mxu0 0.0
    %108 = vmatpush2.msra.mxu0 0.0
    %109 = vmatprep.subr.mxu0 0.0
    %110 = vmatpush2.msra.mxu0 0.0
    %111 = vmatprep.subr.mxu0 0.0
    %112 = vmatpush2.msra.mxu0 0.0
    %113 = vmatprep.subr.mxu0 0.0
    %114 = vmatpush2.msra.mxu0 0.0
    %115 = vmatprep.subr.mxu0 0.0
    %116 = vmatpush2.msra.mxu0 0.0
    %117 = vmatprep.subr.mxu0 0.0
    %118 = vmatpush2.msra.mxu0 0.0
    %119 = vmatprep.subr.mxu0 0.0
    %120 = vmatpush2.msra.mxu0 0.0
    %121 = vmatprep.subr.mxu0 0.0
    %122 = vmatpush2.msra.mxu0 0.0
    %123 = vmatprep.subr.mxu0 0.0
    %124 = vmatpush2.msra.mxu0 0.0
    %125 = vmatprep.subr.mxu0 0.0
    %126 = vmatpush2.msra.mxu0 0.0
    %127 = vmatprep.subr.mxu0 0.0
    %128 = vmatpush2.msra.mxu0 0.0
    %129 = vmatprep.subr.mxu0 0.0
    %130 = vmatpush2.msra.mxu0 0.0
    %131 = vmatprep.subr.mxu0 0.0
    %132 = vmatpush2.msra.mxu0 0.0
    %133 = vmatprep.subr.mxu0 0.0
    %134 = vmatpush2.msra.mxu0 0.0
    %135 = vmatprep.subr.mxu0 0.0
    %136 = vmatpush2.msra.mxu0 0.0
    %137 = vmatprep.mubr.f32.mxu0 0.0
    %138 = vmatmul.mubr.f32.gmra.mxu0 %v71
    %v139 = vpop.f32.mrf.mxu0
    %v140 = vadd.f32 %v67, %v139
    %v141 = vpop.f32.mrf.mxu0
    %142 = vdwg.mxu0
    %v143 = vxor.u32 %v140, 2147483648
    %v144 = vmul.f32 %v143, 1.442695
    %v145 = vpow.pop %v144
    %v146 = vadd.f32 %v145, 1.0
    %v147 = vrcp.pop %v146
    %v148 = vmul.f32 1.0, %v147
    %v149 = vtanh.pop %v140
    %v150 = vmul.f32 %v148, 0.0
    %152 = vrot.lane.b32.xlu0 %v149, 64
    %v153 = vpop.permute.xlu0 %152
    %v155 = vmul.f32 %v148, %v153
    %157 = vrot.lane.b32.xlu0 %v155, 32
    %v158 = vpop.permute.xlu0 %157
    %v160 = vadd.f32 %v150, %v158
    %v161 = vtanh.pop %v160
    %163 = vrot.lane.b32.xlu0 %v161, 64
    %v164 = vpop.permute.xlu0 %163
    %v166 = vmul.f32 %v148, %v164
    %168 = vrot.lane.b32.xlu0 %v166, 64
    %v169 = vpop.permute.xlu0 %168
    %v171 = vsel %vm61, 0.0, %v169
    %v173 = vlaneseq
    %v174 = vshrl.u32 %v173, 7
    %v175 = vsub.s32 0, %v174
    %v176 = vrot.slane %v56, %v175
    %vm178 = vcmask 523264
    %v180 = vsel %vm178, %v171, 0
    %182 = vmatprep.subr.mxu0 0.0
    %183 = vmatpush1.msra.mxu0 0.0
    %184 = vmatprep.subr.mxu0 0.0
    %185 = vmatpush1.msra.mxu0 0.0
    %186 = vmatprep.subr.mxu0 0.0
    %187 = vmatpush1.msra.mxu0 0.0
    %188 = vmatprep.subr.mxu0 0.0
    %189 = vmatpush1.msra.mxu0 0.0
    %190 = vmatprep.subr.mxu0 0.0
    %191 = vmatpush1.msra.mxu0 0.0
    %192 = vmatprep.subr.mxu0 0.0
    %193 = vmatpush1.msra.mxu0 0.0
    %194 = vmatprep.subr.mxu0 0.0
    %195 = vmatpush1.msra.mxu0 0.0
    %196 = vmatprep.subr.mxu0 0.0
    %197 = vmatpush1.msra.mxu0 0.0
    %198 = vmatprep.subr.mxu0 0.0
    %199 = vmatpush1.msra.mxu0 %v54
    %200 = vmatprep.subr.mxu0 0.0
    %201 = vmatpush1.msra.mxu0 %v53
    %202 = vmatprep.subr.mxu0 0.0
    %203 = vmatpush1.msra.mxu0 %v52
    %204 = vmatprep.subr.mxu0 0.0
    %205 = vmatpush1.msra.mxu0 %v51
    %206 = vmatprep.subr.mxu0 0.0
    %207 = vmatpush1.msra.mxu0 %v50
    %208 = vmatprep.subr.mxu0 0.0
    %209 = vmatpush1.msra.mxu0 %v49
    %210 = vmatprep.subr.mxu0 0.0
    %211 = vmatpush1.msra.mxu0 %v48
    %212 = vmatprep.subr.mxu0 0.0
    %213 = vmatpush1.msra.mxu0 %v47
    %214 = vmatprep.subr.mxu0 0.0
    %215 = vmatpush2.msra.mxu0 0.0
    %216 = vmatprep.subr.mxu0 0.0
    %217 = vmatpush2.msra.mxu0 0.0
    %218 = vmatprep.subr.mxu0 0.0
    %219 = vmatpush2.msra.mxu0 0.0
    %220 = vmatprep.subr.mxu0 0.0
    %221 = vmatpush2.msra.mxu0 0.0
    %222 = vmatprep.subr.mxu0 0.0
    %223 = vmatpush2.msra.mxu0 0.0
    %224 = vmatprep.subr.mxu0 0.0
    %225 = vmatpush2.msra.mxu0 0.0
    %226 = vmatprep.subr.mxu0 0.0
    %227 = vmatpush2.msra.mxu0 0.0
    %228 = vmatprep.subr.mxu0 0.0
    %229 = vmatpush2.msra.mxu0 0.0
    %230 = vmatprep.subr.mxu0 0.0
    %231 = vmatpush2.msra.mxu0 0.0
    %232 = vmatprep.subr.mxu0 0.0
    %233 = vmatpush2.msra.mxu0 0.0
    %234 = vmatprep.subr.mxu0 0.0
    %235 = vmatpush2.msra.mxu0 0.0
    %236 = vmatprep.subr.mxu0 0.0
    %237 = vmatpush2.msra.mxu0 0.0
    %238 = vmatprep.subr.mxu0 0.0
    %239 = vmatpush2.msra.mxu0 0.0
    %240 = vmatprep.subr.mxu0 0.0
    %241 = vmatpush2.msra.mxu0 0.0
    %242 = vmatprep.subr.mxu0 0.0
    %243 = vmatpush2.msra.mxu0 0.0
    %244 = vmatprep.subr.mxu0 0.0
    %245 = vmatpush2.msra.mxu0 0.0
    %246 = vmatprep.mubr.f32.mxu0 0.0
    %247 = vmatmul.mubr.f32.gmra.mxu0 %v180
    %v248 = vpop.f32.mrf.mxu0
    %v249 = vadd.f32 %v176, %v248
    %v250 = vpop.f32.mrf.mxu0
    %251 = vdwg.mxu0
    %v252 = vxor.u32 %v249, 2147483648
    %v253 = vmul.f32 %v252, 1.442695
    %v254 = vpow.pop %v253
    %v255 = vadd.f32 %v254, 1.0
    %v256 = vrcp.pop %v255
    %v257 = vmul.f32 1.0, %v256
    %v258 = vtanh.pop %v249
    %v259 = vmul.f32 %v257, 0.0
    %261 = vrot.lane.b32.xlu0 %v258, 64
    %v262 = vpop.permute.xlu0 %261
    %v264 = vmul.f32 %v257, %v262
    %266 = vrot.lane.b32.xlu0 %v264, 32
    %v267 = vpop.permute.xlu0 %266
    %v269 = vadd.f32 %v259, %v267
    %v270 = vtanh.pop %v269
    %272 = vrot.lane.b32.xlu0 %v270, 64
    %v273 = vpop.permute.xlu0 %272
    %v275 = vmul.f32 %v257, %v273
    %276 = vrot.lane.b32.xlu0 %v166, 32
    %v277 = vpop.permute.xlu0 %276
    %279 = vrot.lane.b32.xlu0 %v41, 24
    %v280 = vpop.permute.xlu0 %279
    %v282 = vsel %vm61, %v277, %v280
    %v284 = vsel %vm69, %v282, 0
    %286 = vmatprep.subr.mxu0 0.0
    %287 = vmatpush1.msra.mxu0 0.0
    %288 = vmatprep.subr.mxu0 0.0
    %289 = vmatpush1.msra.mxu0 0.0
    %290 = vmatprep.subr.mxu0 0.0
    %291 = vmatpush1.msra.mxu0 0.0
    %292 = vmatprep.subr.mxu0 0.0
    %293 = vmatpush1.msra.mxu0 0.0
    %294 = vmatprep.subr.mxu0 0.0
    %295 = vmatpush1.msra.mxu0 0.0
    %296 = vmatprep.subr.mxu0 0.0
    %297 = vmatpush1.msra.mxu0 0.0
    %298 = vmatprep.subr.mxu0 0.0
    %299 = vmatpush1.msra.mxu0 0.0
    %300 = vmatprep.subr.mxu0 0.0
    %301 = vmatpush1.msra.mxu0 0.0
    %302 = vmatprep.subr.mxu0 0.0
    %303 = vmatpush1.msra.mxu0 0.0
    %304 = vmatprep.subr.mxu0 0.0
    %305 = vmatpush1.msra.mxu0 0.0
    %306 = vmatprep.subr.mxu0 0.0
    %307 = vmatpush1.msra.mxu0 0.0
    %308 = vmatprep.subr.mxu0 0.0
    %309 = vmatpush1.msra.mxu0 %v46
    %310 = vmatprep.subr.mxu0 0.0
    %311 = vmatpush1.msra.mxu0 %v45
    %312 = vmatprep.subr.mxu0 0.0
    %313 = vmatpush1.msra.mxu0 %v44
    %314 = vmatprep.subr.mxu0 0.0
    %315 = vmatpush1.msra.mxu0 %v43
    %316 = vmatprep.subr.mxu0 0.0
    %317 = vmatpush1.msra.mxu0 %v42
    %318 = vmatprep.subr.mxu0 0.0
    %319 = vmatpush2.msra.mxu0 0.0
    %320 = vmatprep.subr.mxu0 0.0
    %321 = vmatpush2.msra.mxu0 0.0
    %322 = vmatprep.subr.mxu0 0.0
    %323 = vmatpush2.msra.mxu0 0.0
    %324 = vmatprep.subr.mxu0 0.0
    %325 = vmatpush2.msra.mxu0 0.0
    %326 = vmatprep.subr.mxu0 0.0
    %327 = vmatpush2.msra.mxu0 0.0
    %328 = vmatprep.subr.mxu0 0.0
    %329 = vmatpush2.msra.mxu0 0.0
    %330 = vmatprep.subr.mxu0 0.0
    %331 = vmatpush2.msra.mxu0 0.0
    %332 = vmatprep.subr.mxu0 0.0
    %333 = vmatpush2.msra.mxu0 0.0
    %334 = vmatprep.subr.mxu0 0.0
    %335 = vmatpush2.msra.mxu0 0.0
    %336 = vmatprep.subr.mxu0 0.0
    %337 = vmatpush2.msra.mxu0 0.0
    %338 = vmatprep.subr.mxu0 0.0
    %339 = vmatpush2.msra.mxu0 0.0
    %340 = vmatprep.subr.mxu0 0.0
    %341 = vmatpush2.msra.mxu0 0.0
    %342 = vmatprep.subr.mxu0 0.0
    %343 = vmatpush2.msra.mxu0 0.0
    %344 = vmatprep.subr.mxu0 0.0
    %345 = vmatpush2.msra.mxu0 0.0
    %346 = vmatprep.subr.mxu0 0.0
    %347 = vmatpush2.msra.mxu0 0.0
    %348 = vmatprep.subr.mxu0 0.0
    %349 = vmatpush2.msra.mxu0 0.0
    %350 = vmatprep.mubr.f32.mxu0 0.0
    %351 = vmatmul.mubr.f32.gmra.mxu0 %v284
    %v352 = vpop.f32.mrf.mxu0
    %v353 = vadd.f32 %v67, %v352
    %v354 = vpop.f32.mrf.mxu0
    %355 = vdwg.mxu0
    %v356 = vxor.u32 %v353, 2147483648
    %v357 = vmul.f32 %v356, 1.442695
    %v358 = vpow.pop %v357
    %v359 = vadd.f32 %v358, 1.0
    %v360 = vrcp.pop %v359
    %v361 = vmul.f32 1.0, %v360
    %v362 = vtanh.pop %v353
    %v363 = vmul.f32 %v361, %v160
    %365 = vrot.lane.b32.xlu0 %v362, 64
    %v366 = vpop.permute.xlu0 %365
    %v368 = vmul.f32 %v361, %v366
    %370 = vrot.lane.b32.xlu0 %v368, 32
    %v371 = vpop.permute.xlu0 %370
    %v373 = vadd.f32 %v363, %v371
    %v374 = vtanh.pop %v373
    %376 = vrot.lane.b32.xlu0 %v374, 64
    %v377 = vpop.permute.xlu0 %376
    %v379 = vmul.f32 %v361, %v377
    %381 = vrot.lane.b32.xlu0 %v275, 32
    %v382 = vpop.permute.xlu0 %381
    %385 = vrot.lane.b32.xlu0 %v379, 64
    %v386 = vpop.permute.xlu0 %385
    %v388 = vsel %vm61, %v382, %v386
    %v390 = vsel %vm178, %v388, 0
    %392 = vmatprep.subr.mxu0 0.0
    %393 = vmatpush1.msra.mxu0 0.0
    %394 = vmatprep.subr.mxu0 0.0
    %395 = vmatpush1.msra.mxu0 0.0
    %396 = vmatprep.subr.mxu0 0.0
    %397 = vmatpush1.msra.mxu0 0.0
    %398 = vmatprep.subr.mxu0 0.0
    %399 = vmatpush1.msra.mxu0 0.0
    %400 = vmatprep.subr.mxu0 0.0
    %401 = vmatpush1.msra.mxu0 0.0
    %402 = vmatprep.subr.mxu0 0.0
    %403 = vmatpush1.msra.mxu0 0.0
    %404 = vmatprep.subr.mxu0 0.0
    %405 = vmatpush1.msra.mxu0 0.0
    %406 = vmatprep.subr.mxu0 0.0
    %407 = vmatpush1.msra.mxu0 0.0
    %408 = vmatprep.subr.mxu0 0.0
    %409 = vmatpush1.msra.mxu0 %v54
    %410 = vmatprep.subr.mxu0 0.0
    %411 = vmatpush1.msra.mxu0 %v53
    %412 = vmatprep.subr.mxu0 0.0
    %413 = vmatpush1.msra.mxu0 %v52
    %414 = vmatprep.subr.mxu0 0.0
    %415 = vmatpush1.msra.mxu0 %v51
    %416 = vmatprep.subr.mxu0 0.0
    %417 = vmatpush1.msra.mxu0 %v50
    %418 = vmatprep.subr.mxu0 0.0
    %419 = vmatpush1.msra.mxu0 %v49
    %420 = vmatprep.subr.mxu0 0.0
    %421 = vmatpush1.msra.mxu0 %v48
    %422 = vmatprep.subr.mxu0 0.0
    %423 = vmatpush1.msra.mxu0 %v47
    %424 = vmatprep.subr.mxu0 0.0
    %425 = vmatpush2.msra.mxu0 0.0
    %426 = vmatprep.subr.mxu0 0.0
    %427 = vmatpush2.msra.mxu0 0.0
    %428 = vmatprep.subr.mxu0 0.0
    %429 = vmatpush2.msra.mxu0 0.0
    %430 = vmatprep.subr.mxu0 0.0
    %431 = vmatpush2.msra.mxu0 0.0
    %432 = vmatprep.subr.mxu0 0.0
    %433 = vmatpush2.msra.mxu0 0.0
    %434 = vmatprep.subr.mxu0 0.0
    %435 = vmatpush2.msra.mxu0 0.0
    %436 = vmatprep.subr.mxu0 0.0
    %437 = vmatpush2.msra.mxu0 0.0
    %438 = vmatprep.subr.mxu0 0.0
    %439 = vmatpush2.msra.mxu0 0.0
    %440 = vmatprep.subr.mxu0 0.0
    %441 = vmatpush2.msra.mxu0 0.0
    %442 = vmatprep.subr.mxu0 0.0
    %443 = vmatpush2.msra.mxu0 0.0
    %444 = vmatprep.subr.mxu0 0.0
    %445 = vmatpush2.msra.mxu0 0.0
    %446 = vmatprep.subr.mxu0 0.0
    %447 = vmatpush2.msra.mxu0 0.0
    %448 = vmatprep.subr.mxu0 0.0
    %449 = vmatpush2.msra.mxu0 0.0
    %450 = vmatprep.subr.mxu0 0.0
    %451 = vmatpush2.msra.mxu0 0.0
    %452 = vmatprep.subr.mxu0 0.0
    %453 = vmatpush2.msra.mxu0 0.0
    %454 = vmatprep.subr.mxu0 0.0
    %455 = vmatpush2.msra.mxu0 0.0
    %456 = vmatprep.mubr.f32.mxu0 0.0
    %457 = vmatmul.mubr.f32.gmra.mxu0 %v390
    %v458 = vpop.f32.mrf.mxu0
    %v459 = vadd.f32 %v176, %v458
    %v460 = vpop.f32.mrf.mxu0
    %461 = vdwg.mxu0
    %v462 = vxor.u32 %v459, 2147483648
    %v463 = vmul.f32 %v462, 1.442695
    %v464 = vpow.pop %v463
    %v465 = vadd.f32 %v464, 1.0
    %v466 = vrcp.pop %v465
    %v467 = vmul.f32 1.0, %v466
    %v468 = vtanh.pop %v459
    %v469 = vmul.f32 %v467, %v269
    %471 = vrot.lane.b32.xlu0 %v468, 64
    %v472 = vpop.permute.xlu0 %471
    %v474 = vmul.f32 %v467, %v472
    %476 = vrot.lane.b32.xlu0 %v474, 32
    %v477 = vpop.permute.xlu0 %476
    %v479 = vadd.f32 %v469, %v477
    %v480 = vtanh.pop %v479
    %482 = vrot.lane.b32.xlu0 %v480, 64
    %v483 = vpop.permute.xlu0 %482
    %v485 = vmul.f32 %v467, %v483
    %486 = vrot.lane.b32.xlu0 %v379, 32
    %v487 = vpop.permute.xlu0 %486
    %489 = vrot.lane.b32.xlu0 %v41, 16
    %v490 = vpop.permute.xlu0 %489
    %v492 = vsel %vm61, %v487, %v490
    %v494 = vsel %vm69, %v492, 0
    %496 = vmatprep.subr.mxu0 0.0
    %497 = vmatpush1.msra.mxu0 0.0
    %498 = vmatprep.subr.mxu0 0.0
    %499 = vmatpush1.msra.mxu0 0.0
    %500 = vmatprep.subr.mxu0 0.0
    %501 = vmatpush1.msra.mxu0 0.0
    %502 = vmatprep.subr.mxu0 0.0
    %503 = vmatpush1.msra.mxu0 0.0
    %504 = vmatprep.subr.mxu0 0.0
    %505 = vmatpush1.msra.mxu0 0.0
    %506 = vmatprep.subr.mxu0 0.0
    %507 = vmatpush1.msra.mxu0 0.0
    %508 = vmatprep.subr.mxu0 0.0
    %509 = vmatpush1.msra.mxu0 0.0
    %510 = vmatprep.subr.mxu0 0.0
    %511 = vmatpush1.msra.mxu0 0.0
    %512 = vmatprep.subr.mxu0 0.0
    %513 = vmatpush1.msra.mxu0 0.0
    %514 = vmatprep.subr.mxu0 0.0
    %515 = vmatpush1.msra.mxu0 0.0
    %516 = vmatprep.subr.mxu0 0.0
    %517 = vmatpush1.msra.mxu0 0.0
    %518 = vmatprep.subr.mxu0 0.0
    %519 = vmatpush1.msra.mxu0 %v46
    %520 = vmatprep.subr.mxu0 0.0
    %521 = vmatpush1.msra.mxu0 %v45
    %522 = vmatprep.subr.mxu0 0.0
    %523 = vmatpush1.msra.mxu0 %v44
    %524 = vmatprep.subr.mxu0 0.0
    %525 = vmatpush1.msra.mxu0 %v43
    %526 = vmatprep.subr.mxu0 0.0
    %527 = vmatpush1.msra.mxu0 %v42
    %528 = vmatprep.subr.mxu0 0.0
    %529 = vmatpush2.msra.mxu0 0.0
    %530 = vmatprep.subr.mxu0 0.0
    %531 = vmatpush2.msra.mxu0 0.0
    %532 = vmatprep.subr.mxu0 0.0
    %533 = vmatpush2.msra.mxu0 0.0
    %534 = vmatprep.subr.mxu0 0.0
    %535 = vmatpush2.msra.mxu0 0.0
    %536 = vmatprep.subr.mxu0 0.0
    %537 = vmatpush2.msra.mxu0 0.0
    %538 = vmatprep.subr.mxu0 0.0
    %539 = vmatpush2.msra.mxu0 0.0
    %540 = vmatprep.subr.mxu0 0.0
    %541 = vmatpush2.msra.mxu0 0.0
    %542 = vmatprep.subr.mxu0 0.0
    %543 = vmatpush2.msra.mxu0 0.0
    %544 = vmatprep.subr.mxu0 0.0
    %545 = vmatpush2.msra.mxu0 0.0
    %546 = vmatprep.subr.mxu0 0.0
    %547 = vmatpush2.msra.mxu0 0.0
    %548 = vmatprep.subr.mxu0 0.0
    %549 = vmatpush2.msra.mxu0 0.0
    %550 = vmatprep.subr.mxu0 0.0
    %551 = vmatpush2.msra.mxu0 0.0
    %552 = vmatprep.subr.mxu0 0.0
    %553 = vmatpush2.msra.mxu0 0.0
    %554 = vmatprep.subr.mxu0 0.0
    %555 = vmatpush2.msra.mxu0 0.0
    %556 = vmatprep.subr.mxu0 0.0
    %557 = vmatpush2.msra.mxu0 0.0
    %558 = vmatprep.subr.mxu0 0.0
    %559 = vmatpush2.msra.mxu0 0.0
    %560 = vmatprep.mubr.f32.mxu0 0.0
    %561 = vmatmul.mubr.f32.gmra.mxu0 %v494
    %v562 = vpop.f32.mrf.mxu0
    %v563 = vadd.f32 %v67, %v562
    %v564 = vpop.f32.mrf.mxu0
    %565 = vdwg.mxu0
    %v566 = vxor.u32 %v563, 2147483648
    %v567 = vmul.f32 %v566, 1.442695
    %v568 = vpow.pop %v567
    %v569 = vadd.f32 %v568, 1.0
    %v570 = vrcp.pop %v569
    %v571 = vmul.f32 1.0, %v570
    %v572 = vtanh.pop %v563
    %v573 = vmul.f32 %v571, %v373
    %575 = vrot.lane.b32.xlu0 %v572, 64
    %v576 = vpop.permute.xlu0 %575
    %v578 = vmul.f32 %v571, %v576
    %580 = vrot.lane.b32.xlu0 %v578, 32
    %v581 = vpop.permute.xlu0 %580
    %v583 = vadd.f32 %v573, %v581
    %v584 = vtanh.pop %v583
    %586 = vrot.lane.b32.xlu0 %v584, 64
    %v587 = vpop.permute.xlu0 %586
    %v589 = vmul.f32 %v571, %v587
    %591 = vrot.lane.b32.xlu0 %v485, 32
    %v592 = vpop.permute.xlu0 %591
    %595 = vrot.lane.b32.xlu0 %v589, 64
    %v596 = vpop.permute.xlu0 %595
    %v598 = vsel %vm61, %v592, %v596
    %v600 = vsel %vm178, %v598, 0
    %602 = vmatprep.subr.mxu0 0.0
    %603 = vmatpush1.msra.mxu0 0.0
    %604 = vmatprep.subr.mxu0 0.0
    %605 = vmatpush1.msra.mxu0 0.0
    %606 = vmatprep.subr.mxu0 0.0
    %607 = vmatpush1.msra.mxu0 0.0
    %608 = vmatprep.subr.mxu0 0.0
    %609 = vmatpush1.msra.mxu0 0.0
    %610 = vmatprep.subr.mxu0 0.0
    %611 = vmatpush1.msra.mxu0 0.0
    %612 = vmatprep.subr.mxu0 0.0
    %613 = vmatpush1.msra.mxu0 0.0
    %614 = vmatprep.subr.mxu0 0.0
    %615 = vmatpush1.msra.mxu0 0.0
    %616 = vmatprep.subr.mxu0 0.0
    %617 = vmatpush1.msra.mxu0 0.0
    %618 = vmatprep.subr.mxu0 0.0
    %619 = vmatpush1.msra.mxu0 %v54
    %620 = vmatprep.subr.mxu0 0.0
    %621 = vmatpush1.msra.mxu0 %v53
    %622 = vmatprep.subr.mxu0 0.0
    %623 = vmatpush1.msra.mxu0 %v52
    %624 = vmatprep.subr.mxu0 0.0
    %625 = vmatpush1.msra.mxu0 %v51
    %626 = vmatprep.subr.mxu0 0.0
    %627 = vmatpush1.msra.mxu0 %v50
    %628 = vmatprep.subr.mxu0 0.0
    %629 = vmatpush1.msra.mxu0 %v49
    %630 = vmatprep.subr.mxu0 0.0
    %631 = vmatpush1.msra.mxu0 %v48
    %632 = vmatprep.subr.mxu0 0.0
    %633 = vmatpush1.msra.mxu0 %v47
    %634 = vmatprep.subr.mxu0 0.0
    %635 = vmatpush2.msra.mxu0 0.0
    %636 = vmatprep.subr.mxu0 0.0
    %637 = vmatpush2.msra.mxu0 0.0
    %638 = vmatprep.subr.mxu0 0.0
    %639 = vmatpush2.msra.mxu0 0.0
    %640 = vmatprep.subr.mxu0 0.0
    %641 = vmatpush2.msra.mxu0 0.0
    %642 = vmatprep.subr.mxu0 0.0
    %643 = vmatpush2.msra.mxu0 0.0
    %644 = vmatprep.subr.mxu0 0.0
    %645 = vmatpush2.msra.mxu0 0.0
    %646 = vmatprep.subr.mxu0 0.0
    %647 = vmatpush2.msra.mxu0 0.0
    %648 = vmatprep.subr.mxu0 0.0
    %649 = vmatpush2.msra.mxu0 0.0
    %650 = vmatprep.subr.mxu0 0.0
    %651 = vmatpush2.msra.mxu0 0.0
    %652 = vmatprep.subr.mxu0 0.0
    %653 = vmatpush2.msra.mxu0 0.0
    %654 = vmatprep.subr.mxu0 0.0
    %655 = vmatpush2.msra.mxu0 0.0
    %656 = vmatprep.subr.mxu0 0.0
    %657 = vmatpush2.msra.mxu0 0.0
    %658 = vmatprep.subr.mxu0 0.0
    %659 = vmatpush2.msra.mxu0 0.0
    %660 = vmatprep.subr.mxu0 0.0
    %661 = vmatpush2.msra.mxu0 0.0
    %662 = vmatprep.subr.mxu0 0.0
    %663 = vmatpush2.msra.mxu0 0.0
    %664 = vmatprep.subr.mxu0 0.0
    %665 = vmatpush2.msra.mxu0 0.0
    %666 = vmatprep.mubr.f32.mxu0 0.0
    %667 = vmatmul.mubr.f32.gmra.mxu0 %v600
    %v668 = vpop.f32.mrf.mxu0
    %v669 = vadd.f32 %v176, %v668
    %v670 = vpop.f32.mrf.mxu0
    %671 = vdwg.mxu0
    %v672 = vxor.u32 %v669, 2147483648
    %v673 = vmul.f32 %v672, 1.442695
    %v674 = vpow.pop %v673
    %v675 = vadd.f32 %v674, 1.0
    %v676 = vrcp.pop %v675
    %v677 = vmul.f32 1.0, %v676
    %v678 = vtanh.pop %v669
    %v679 = vmul.f32 %v677, %v479
    %681 = vrot.lane.b32.xlu0 %v678, 64
    %v682 = vpop.permute.xlu0 %681
    %v684 = vmul.f32 %v677, %v682
    %686 = vrot.lane.b32.xlu0 %v684, 32
    %v687 = vpop.permute.xlu0 %686
    %v689 = vadd.f32 %v679, %v687
    %v690 = vtanh.pop %v689
    %692 = vrot.lane.b32.xlu0 %v690, 64
    %v693 = vpop.permute.xlu0 %692
    %v695 = vmul.f32 %v677, %v693
    %696 = vrot.lane.b32.xlu0 %v589, 32
    %v697 = vpop.permute.xlu0 %696
    %699 = vrot.lane.b32.xlu0 %v41, 8
    %v700 = vpop.permute.xlu0 %699
    %v702 = vsel %vm61, %v697, %v700
    %v704 = vsel %vm69, %v702, 0
    %706 = vmatprep.subr.mxu0 0.0
    %707 = vmatpush1.msra.mxu0 0.0
    %708 = vmatprep.subr.mxu0 0.0
    %709 = vmatpush1.msra.mxu0 0.0
    %710 = vmatprep.subr.mxu0 0.0
    %711 = vmatpush1.msra.mxu0 0.0
    %712 = vmatprep.subr.mxu0 0.0
    %713 = vmatpush1.msra.mxu0 0.0
    %714 = vmatprep.subr.mxu0 0.0
    %715 = vmatpush1.msra.mxu0 0.0
    %716 = vmatprep.subr.mxu0 0.0
    %717 = vmatpush1.msra.mxu0 0.0
    %718 = vmatprep.subr.mxu0 0.0
    %719 = vmatpush1.msra.mxu0 0.0
    %720 = vmatprep.subr.mxu0 0.0
    %721 = vmatpush1.msra.mxu0 0.0
    %722 = vmatprep.subr.mxu0 0.0
    %723 = vmatpush1.msra.mxu0 0.0
    %724 = vmatprep.subr.mxu0 0.0
    %725 = vmatpush1.msra.mxu0 0.0
    %726 = vmatprep.subr.mxu0 0.0
    %727 = vmatpush1.msra.mxu0 0.0
    %728 = vmatprep.subr.mxu0 0.0
    %729 = vmatpush1.msra.mxu0 %v46
    %730 = vmatprep.subr.mxu0 0.0
    %731 = vmatpush1.msra.mxu0 %v45
    %732 = vmatprep.subr.mxu0 0.0
    %733 = vmatpush1.msra.mxu0 %v44
    %734 = vmatprep.subr.mxu0 0.0
    %735 = vmatpush1.msra.mxu0 %v43
    %736 = vmatprep.subr.mxu0 0.0
    %737 = vmatpush1.msra.mxu0 %v42
    %738 = vmatprep.subr.mxu0 0.0
    %739 = vmatpush2.msra.mxu0 0.0
    %740 = vmatprep.subr.mxu0 0.0
    %741 = vmatpush2.msra.mxu0 0.0
    %742 = vmatprep.subr.mxu0 0.0
    %743 = vmatpush2.msra.mxu0 0.0
    %744 = vmatprep.subr.mxu0 0.0
    %745 = vmatpush2.msra.mxu0 0.0
    %746 = vmatprep.subr.mxu0 0.0
    %747 = vmatpush2.msra.mxu0 0.0
    %748 = vmatprep.subr.mxu0 0.0
    %749 = vmatpush2.msra.mxu0 0.0
    %750 = vmatprep.subr.mxu0 0.0
    %751 = vmatpush2.msra.mxu0 0.0
    %752 = vmatprep.subr.mxu0 0.0
    %753 = vmatpush2.msra.mxu0 0.0
    %754 = vmatprep.subr.mxu0 0.0
    %755 = vmatpush2.msra.mxu0 0.0
    %756 = vmatprep.subr.mxu0 0.0
    %757 = vmatpush2.msra.mxu0 0.0
    %758 = vmatprep.subr.mxu0 0.0
    %759 = vmatpush2.msra.mxu0 0.0
    %760 = vmatprep.subr.mxu0 0.0
    %761 = vmatpush2.msra.mxu0 0.0
    %762 = vmatprep.subr.mxu0 0.0
    %763 = vmatpush2.msra.mxu0 0.0
    %764 = vmatprep.subr.mxu0 0.0
    %765 = vmatpush2.msra.mxu0 0.0
    %766 = vmatprep.subr.mxu0 0.0
    %767 = vmatpush2.msra.mxu0 0.0
    %768 = vmatprep.subr.mxu0 0.0
    %769 = vmatpush2.msra.mxu0 0.0
    %770 = vmatprep.mubr.f32.mxu0 0.0
    %771 = vmatmul.mubr.f32.gmra.mxu0 %v704
    %v772 = vpop.f32.mrf.mxu0
    %v773 = vadd.f32 %v67, %v772
    %v774 = vpop.f32.mrf.mxu0
    %775 = vdwg.mxu0
    %v776 = vxor.u32 %v773, 2147483648
    %v777 = vmul.f32 %v776, 1.442695
    %v778 = vpow.pop %v777
    %v779 = vadd.f32 %v778, 1.0
    %v780 = vrcp.pop %v779
    %v781 = vmul.f32 1.0, %v780
    %v782 = vtanh.pop %v773
    %v783 = vmul.f32 %v781, %v583
    %785 = vrot.lane.b32.xlu0 %v782, 64
    %v786 = vpop.permute.xlu0 %785
    %v788 = vmul.f32 %v781, %v786
    %790 = vrot.lane.b32.xlu0 %v788, 32
    %v791 = vpop.permute.xlu0 %790
    %v793 = vadd.f32 %v783, %v791
    %v794 = vtanh.pop %v793
    %796 = vrot.lane.b32.xlu0 %v794, 64
    %v797 = vpop.permute.xlu0 %796
    %v799 = vmul.f32 %v781, %v797
    %801 = vrot.lane.b32.xlu0 %v695, 32
    %v802 = vpop.permute.xlu0 %801
    %805 = vrot.lane.b32.xlu0 %v799, 64
    %v806 = vpop.permute.xlu0 %805
    %v808 = vsel %vm61, %v802, %v806
    %v810 = vsel %vm178, %v808, 0
    %812 = vmatprep.subr.mxu0 0.0
    %813 = vmatpush1.msra.mxu0 0.0
    %814 = vmatprep.subr.mxu0 0.0
    %815 = vmatpush1.msra.mxu0 0.0
    %816 = vmatprep.subr.mxu0 0.0
    %817 = vmatpush1.msra.mxu0 0.0
    %818 = vmatprep.subr.mxu0 0.0
    %819 = vmatpush1.msra.mxu0 0.0
    %820 = vmatprep.subr.mxu0 0.0
    %821 = vmatpush1.msra.mxu0 0.0
    %822 = vmatprep.subr.mxu0 0.0
    %823 = vmatpush1.msra.mxu0 0.0
    %824 = vmatprep.subr.mxu0 0.0
    %825 = vmatpush1.msra.mxu0 0.0
    %826 = vmatprep.subr.mxu0 0.0
    %827 = vmatpush1.msra.mxu0 0.0
    %828 = vmatprep.subr.mxu0 0.0
    %829 = vmatpush1.msra.mxu0 %v54
    %830 = vmatprep.subr.mxu0 0.0
    %831 = vmatpush1.msra.mxu0 %v53
    %832 = vmatprep.subr.mxu0 0.0
    %833 = vmatpush1.msra.mxu0 %v52
    %834 = vmatprep.subr.mxu0 0.0
    %835 = vmatpush1.msra.mxu0 %v51
    %836 = vmatprep.subr.mxu0 0.0
    %837 = vmatpush1.msra.mxu0 %v50
    %838 = vmatprep.subr.mxu0 0.0
    %839 = vmatpush1.msra.mxu0 %v49
    %840 = vmatprep.subr.mxu0 0.0
    %841 = vmatpush1.msra.mxu0 %v48
    %842 = vmatprep.subr.mxu0 0.0
    %843 = vmatpush1.msra.mxu0 %v47
    %844 = vmatprep.subr.mxu0 0.0
    %845 = vmatpush2.msra.mxu0 0.0
    %846 = vmatprep.subr.mxu0 0.0
    %847 = vmatpush2.msra.mxu0 0.0
    %848 = vmatprep.subr.mxu0 0.0
    %849 = vmatpush2.msra.mxu0 0.0
    %850 = vmatprep.subr.mxu0 0.0
    %851 = vmatpush2.msra.mxu0 0.0
    %852 = vmatprep.subr.mxu0 0.0
    %853 = vmatpush2.msra.mxu0 0.0
    %854 = vmatprep.subr.mxu0 0.0
    %855 = vmatpush2.msra.mxu0 0.0
    %856 = vmatprep.subr.mxu0 0.0
    %857 = vmatpush2.msra.mxu0 0.0
    %858 = vmatprep.subr.mxu0 0.0
    %859 = vmatpush2.msra.mxu0 0.0
    %860 = vmatprep.subr.mxu0 0.0
    %861 = vmatpush2.msra.mxu0 0.0
    %862 = vmatprep.subr.mxu0 0.0
    %863 = vmatpush2.msra.mxu0 0.0
    %864 = vmatprep.subr.mxu0 0.0
    %865 = vmatpush2.msra.mxu0 0.0
    %866 = vmatprep.subr.mxu0 0.0
    %867 = vmatpush2.msra.mxu0 0.0
    %868 = vmatprep.subr.mxu0 0.0
    %869 = vmatpush2.msra.mxu0 0.0
    %870 = vmatprep.subr.mxu0 0.0
    %871 = vmatpush2.msra.mxu0 0.0
    %872 = vmatprep.subr.mxu0 0.0
    %873 = vmatpush2.msra.mxu0 0.0
    %874 = vmatprep.subr.mxu0 0.0
    %875 = vmatpush2.msra.mxu0 0.0
    %876 = vmatprep.mubr.f32.mxu0 0.0
    %877 = vmatmul.mubr.f32.gmra.mxu0 %v810
    %v878 = vpop.f32.mrf.mxu0
    %v879 = vadd.f32 %v176, %v878
    %v880 = vpop.f32.mrf.mxu0
    %881 = vdwg.mxu0
    %v882 = vxor.u32 %v879, 2147483648
    %v883 = vmul.f32 %v882, 1.442695
    %v884 = vpow.pop %v883
    %v885 = vadd.f32 %v884, 1.0
    %v886 = vrcp.pop %v885
    %v887 = vmul.f32 1.0, %v886
    %v888 = vtanh.pop %v879
    %v889 = vmul.f32 %v887, %v689
    %891 = vrot.lane.b32.xlu0 %v888, 64
    %v892 = vpop.permute.xlu0 %891
    %v894 = vmul.f32 %v887, %v892
    %896 = vrot.lane.b32.xlu0 %v894, 32
    %v897 = vpop.permute.xlu0 %896
    %v899 = vadd.f32 %v889, %v897
    %v900 = vtanh.pop %v899
    %902 = vrot.lane.b32.xlu0 %v900, 64
    %v903 = vpop.permute.xlu0 %902
    %v905 = vmul.f32 %v887, %v903
    %906 = vrot.lane.b32.xlu0 %v799, 32
    %v907 = vpop.permute.xlu0 %906
    %v909 = vsel %vm61, %v907, %v41
    %v911 = vsel %vm69, %v909, 0
    %913 = vmatprep.subr.mxu0 0.0
    %914 = vmatpush1.msra.mxu0 0.0
    %915 = vmatprep.subr.mxu0 0.0
    %916 = vmatpush1.msra.mxu0 0.0
    %917 = vmatprep.subr.mxu0 0.0
    %918 = vmatpush1.msra.mxu0 0.0
    %919 = vmatprep.subr.mxu0 0.0
    %920 = vmatpush1.msra.mxu0 0.0
    %921 = vmatprep.subr.mxu0 0.0
    %922 = vmatpush1.msra.mxu0 0.0
    %923 = vmatprep.subr.mxu0 0.0
    %924 = vmatpush1.msra.mxu0 0.0
    %925 = vmatprep.subr.mxu0 0.0
    %926 = vmatpush1.msra.mxu0 0.0
    %927 = vmatprep.subr.mxu0 0.0
    %928 = vmatpush1.msra.mxu0 0.0
    %929 = vmatprep.subr.mxu0 0.0
    %930 = vmatpush1.msra.mxu0 0.0
    %931 = vmatprep.subr.mxu0 0.0
    %932 = vmatpush1.msra.mxu0 0.0
    %933 = vmatprep.subr.mxu0 0.0
    %934 = vmatpush1.msra.mxu0 0.0
    %935 = vmatprep.subr.mxu0 0.0
    %936 = vmatpush1.msra.mxu0 %v46
    %937 = vmatprep.subr.mxu0 0.0
    %938 = vmatpush1.msra.mxu0 %v45
    %939 = vmatprep.subr.mxu0 0.0
    %940 = vmatpush1.msra.mxu0 %v44
    %941 = vmatprep.subr.mxu0 0.0
    %942 = vmatpush1.msra.mxu0 %v43
    %943 = vmatprep.subr.mxu0 0.0
    %944 = vmatpush1.msra.mxu0 %v42
    %945 = vmatprep.subr.mxu0 0.0
    %946 = vmatpush2.msra.mxu0 0.0
    %947 = vmatprep.subr.mxu0 0.0
    %948 = vmatpush2.msra.mxu0 0.0
    %949 = vmatprep.subr.mxu0 0.0
    %950 = vmatpush2.msra.mxu0 0.0
    %951 = vmatprep.subr.mxu0 0.0
    %952 = vmatpush2.msra.mxu0 0.0
    %953 = vmatprep.subr.mxu0 0.0
    %954 = vmatpush2.msra.mxu0 0.0
    %955 = vmatprep.subr.mxu0 0.0
    %956 = vmatpush2.msra.mxu0 0.0
    %957 = vmatprep.subr.mxu0 0.0
    %958 = vmatpush2.msra.mxu0 0.0
    %959 = vmatprep.subr.mxu0 0.0
    %960 = vmatpush2.msra.mxu0 0.0
    %961 = vmatprep.subr.mxu0 0.0
    %962 = vmatpush2.msra.mxu0 0.0
    %963 = vmatprep.subr.mxu0 0.0
    %964 = vmatpush2.msra.mxu0 0.0
    %965 = vmatprep.subr.mxu0 0.0
    %966 = vmatpush2.msra.mxu0 0.0
    %967 = vmatprep.subr.mxu0 0.0
    %968 = vmatpush2.msra.mxu0 0.0
    %969 = vmatprep.subr.mxu0 0.0
    %970 = vmatpush2.msra.mxu0 0.0
    %971 = vmatprep.subr.mxu0 0.0
    %972 = vmatpush2.msra.mxu0 0.0
    %973 = vmatprep.subr.mxu0 0.0
    %974 = vmatpush2.msra.mxu0 0.0
    %975 = vmatprep.subr.mxu0 0.0
    %976 = vmatpush2.msra.mxu0 0.0
    %977 = vmatprep.mubr.f32.mxu0 0.0
    %978 = vmatmul.mubr.f32.gmra.mxu0 %v911
    %v979 = vpop.f32.mrf.mxu0
    %v980 = vadd.f32 %v67, %v979
    %v981 = vpop.f32.mrf.mxu0
    %982 = vdwg.mxu0
    %v983 = vxor.u32 %v980, 2147483648
    %v984 = vmul.f32 %v983, 1.442695
    %v985 = vpow.pop %v984
    %v986 = vadd.f32 %v985, 1.0
    %v987 = vrcp.pop %v986
    %v988 = vmul.f32 1.0, %v987
    %v989 = vtanh.pop %v980
    %v990 = vmul.f32 %v988, %v793
    %992 = vrot.lane.b32.xlu0 %v989, 64
    %v993 = vpop.permute.xlu0 %992
    %v995 = vmul.f32 %v988, %v993
    %997 = vrot.lane.b32.xlu0 %v995, 32
    %v998 = vpop.permute.xlu0 %997
    %v1000 = vadd.f32 %v990, %v998
    %v1001 = vtanh.pop %v1000
    %1003 = vrot.lane.b32.xlu0 %v1001, 64
    %v1004 = vpop.permute.xlu0 %1003
    %v1006 = vmul.f32 %v988, %v1004
    %1008 = vrot.lane.b32.xlu0 %v905, 32
    %v1009 = vpop.permute.xlu0 %1008
    %1012 = vrot.lane.b32.xlu0 %v1006, 64
    %v1013 = vpop.permute.xlu0 %1012
    %v1015 = vsel %vm61, %v1009, %v1013
    %v1017 = vsel %vm178, %v1015, 0
    %1019 = vmatprep.subr.mxu0 0.0
    %1020 = vmatpush1.msra.mxu0 0.0
    %1021 = vmatprep.subr.mxu0 0.0
    %1022 = vmatpush1.msra.mxu0 0.0
    %1023 = vmatprep.subr.mxu0 0.0
    %1024 = vmatpush1.msra.mxu0 0.0
    %1025 = vmatprep.subr.mxu0 0.0
    %1026 = vmatpush1.msra.mxu0 0.0
    %1027 = vmatprep.subr.mxu0 0.0
    %1028 = vmatpush1.msra.mxu0 0.0
    %1029 = vmatprep.subr.mxu0 0.0
    %1030 = vmatpush1.msra.mxu0 0.0
    %1031 = vmatprep.subr.mxu0 0.0
    %1032 = vmatpush1.msra.mxu0 0.0
    %1033 = vmatprep.subr.mxu0 0.0
    %1034 = vmatpush1.msra.mxu0 0.0
    %1035 = vmatprep.subr.mxu0 0.0
    %1036 = vmatpush1.msra.mxu0 %v54
    %1037 = vmatprep.subr.mxu0 0.0
    %1038 = vmatpush1.msra.mxu0 %v53
    %1039 = vmatprep.subr.mxu0 0.0
    %1040 = vmatpush1.msra.mxu0 %v52
    %1041 = vmatprep.subr.mxu0 0.0
    %1042 = vmatpush1.msra.mxu0 %v51
    %1043 = vmatprep.subr.mxu0 0.0
    %1044 = vmatpush1.msra.mxu0 %v50
    %1045 = vmatprep.subr.mxu0 0.0
    %1046 = vmatpush1.msra.mxu0 %v49
    %1047 = vmatprep.subr.mxu0 0.0
    %1048 = vmatpush1.msra.mxu0 %v48
    %1049 = vmatprep.subr.mxu0 0.0
    %1050 = vmatpush1.msra.mxu0 %v47
    %1051 = vmatprep.subr.mxu0 0.0
    %1052 = vmatpush2.msra.mxu0 0.0
    %1053 = vmatprep.subr.mxu0 0.0
    %1054 = vmatpush2.msra.mxu0 0.0
    %1055 = vmatprep.subr.mxu0 0.0
    %1056 = vmatpush2.msra.mxu0 0.0
    %1057 = vmatprep.subr.mxu0 0.0
    %1058 = vmatpush2.msra.mxu0 0.0
    %1059 = vmatprep.subr.mxu0 0.0
    %1060 = vmatpush2.msra.mxu0 0.0
    %1061 = vmatprep.subr.mxu0 0.0
    %1062 = vmatpush2.msra.mxu0 0.0
    %1063 = vmatprep.subr.mxu0 0.0
    %1064 = vmatpush2.msra.mxu0 0.0
    %1065 = vmatprep.subr.mxu0 0.0
    %1066 = vmatpush2.msra.mxu0 0.0
    %1067 = vmatprep.subr.mxu0 0.0
    %1068 = vmatpush2.msra.mxu0 0.0
    %1069 = vmatprep.subr.mxu0 0.0
    %1070 = vmatpush2.msra.mxu0 0.0
    %1071 = vmatprep.subr.mxu0 0.0
    %1072 = vmatpush2.msra.mxu0 0.0
    %1073 = vmatprep.subr.mxu0 0.0
    %1074 = vmatpush2.msra.mxu0 0.0
    %1075 = vmatprep.subr.mxu0 0.0
    %1076 = vmatpush2.msra.mxu0 0.0
    %1077 = vmatprep.subr.mxu0 0.0
    %1078 = vmatpush2.msra.mxu0 0.0
    %1079 = vmatprep.subr.mxu0 0.0
    %1080 = vmatpush2.msra.mxu0 0.0
    %1081 = vmatprep.subr.mxu0 0.0
    %1082 = vmatpush2.msra.mxu0 0.0
    %1083 = vmatprep.mubr.f32.mxu0 0.0
    %1084 = vmatmul.mubr.f32.gmra.mxu0 %v1017
    %v1085 = vpop.f32.mrf.mxu0
    %v1086 = vadd.f32 %v176, %v1085
    %v1087 = vpop.f32.mrf.mxu0
    %1088 = vdwg.mxu0
    %v1089 = vxor.u32 %v1086, 2147483648
    %v1090 = vmul.f32 %v1089, 1.442695
    %v1091 = vpow.pop %v1090
    %v1092 = vadd.f32 %v1091, 1.0
    %v1093 = vrcp.pop %v1092
    %v1094 = vmul.f32 1.0, %v1093
    %v1095 = vtanh.pop %v1086
    %v1096 = vmul.f32 %v1094, %v899
    %1098 = vrot.lane.b32.xlu0 %v1095, 64
    %v1099 = vpop.permute.xlu0 %1098
    %v1101 = vmul.f32 %v1094, %v1099
    %1103 = vrot.lane.b32.xlu0 %v1101, 32
    %v1104 = vpop.permute.xlu0 %1103
    %v1106 = vadd.f32 %v1096, %v1104
    %v1107 = vtanh.pop %v1106
    %1109 = vrot.lane.b32.xlu0 %v1107, 64
    %v1110 = vpop.permute.xlu0 %1109
    %v1112 = vmul.f32 %v1094, %v1110
    %1113 = vrot.lane.b32.xlu0 %v1006, 32
    %v1114 = vpop.permute.xlu0 %1113
    %1116 = vrot.lane.b32.xlu0 %v41, 120
    %v1117 = vpop.permute.xlu0 %1116
    %v1119 = vsel %vm61, %v1114, %v1117
    %v1121 = vsel %vm69, %v1119, 0
    %1123 = vmatprep.subr.mxu0 0.0
    %1124 = vmatpush1.msra.mxu0 0.0
    %1125 = vmatprep.subr.mxu0 0.0
    %1126 = vmatpush1.msra.mxu0 0.0
    %1127 = vmatprep.subr.mxu0 0.0
    %1128 = vmatpush1.msra.mxu0 0.0
    %1129 = vmatprep.subr.mxu0 0.0
    %1130 = vmatpush1.msra.mxu0 0.0
    %1131 = vmatprep.subr.mxu0 0.0
    %1132 = vmatpush1.msra.mxu0 0.0
    %1133 = vmatprep.subr.mxu0 0.0
    %1134 = vmatpush1.msra.mxu0 0.0
    %1135 = vmatprep.subr.mxu0 0.0
    %1136 = vmatpush1.msra.mxu0 0.0
    %1137 = vmatprep.subr.mxu0 0.0
    %1138 = vmatpush1.msra.mxu0 0.0
    %1139 = vmatprep.subr.mxu0 0.0
    %1140 = vmatpush1.msra.mxu0 0.0
    %1141 = vmatprep.subr.mxu0 0.0
    %1142 = vmatpush1.msra.mxu0 0.0
    %1143 = vmatprep.subr.mxu0 0.0
    %1144 = vmatpush1.msra.mxu0 0.0
    %1145 = vmatprep.subr.mxu0 0.0
    %1146 = vmatpush1.msra.mxu0 %v46
    %1147 = vmatprep.subr.mxu0 0.0
    %1148 = vmatpush1.msra.mxu0 %v45
    %1149 = vmatprep.subr.mxu0 0.0
    %1150 = vmatpush1.msra.mxu0 %v44
    %1151 = vmatprep.subr.mxu0 0.0
    %1152 = vmatpush1.msra.mxu0 %v43
    %1153 = vmatprep.subr.mxu0 0.0
    %1154 = vmatpush1.msra.mxu0 %v42
    %1155 = vmatprep.subr.mxu0 0.0
    %1156 = vmatpush2.msra.mxu0 0.0
    %1157 = vmatprep.subr.mxu0 0.0
    %1158 = vmatpush2.msra.mxu0 0.0
    %1159 = vmatprep.subr.mxu0 0.0
    %1160 = vmatpush2.msra.mxu0 0.0
    %1161 = vmatprep.subr.mxu0 0.0
    %1162 = vmatpush2.msra.mxu0 0.0
    %1163 = vmatprep.subr.mxu0 0.0
    %1164 = vmatpush2.msra.mxu0 0.0
    %1165 = vmatprep.subr.mxu0 0.0
    %1166 = vmatpush2.msra.mxu0 0.0
    %1167 = vmatprep.subr.mxu0 0.0
    %1168 = vmatpush2.msra.mxu0 0.0
    %1169 = vmatprep.subr.mxu0 0.0
    %1170 = vmatpush2.msra.mxu0 0.0
    %1171 = vmatprep.subr.mxu0 0.0
    %1172 = vmatpush2.msra.mxu0 0.0
    %1173 = vmatprep.subr.mxu0 0.0
    %1174 = vmatpush2.msra.mxu0 0.0
    %1175 = vmatprep.subr.mxu0 0.0
    %1176 = vmatpush2.msra.mxu0 0.0
    %1177 = vmatprep.subr.mxu0 0.0
    %1178 = vmatpush2.msra.mxu0 0.0
    %1179 = vmatprep.subr.mxu0 0.0
    %1180 = vmatpush2.msra.mxu0 0.0
    %1181 = vmatprep.subr.mxu0 0.0
    %1182 = vmatpush2.msra.mxu0 0.0
    %1183 = vmatprep.subr.mxu0 0.0
    %1184 = vmatpush2.msra.mxu0 0.0
    %1185 = vmatprep.subr.mxu0 0.0
    %1186 = vmatpush2.msra.mxu0 0.0
    %1187 = vmatprep.mubr.f32.mxu0 0.0
    %1188 = vmatmul.mubr.f32.gmra.mxu0 %v1121
    %v1189 = vpop.f32.mrf.mxu0
    %v1190 = vadd.f32 %v67, %v1189
    %v1191 = vpop.f32.mrf.mxu0
    %1192 = vdwg.mxu0
    %v1193 = vxor.u32 %v1190, 2147483648
    %v1194 = vmul.f32 %v1193, 1.442695
    %v1195 = vpow.pop %v1194
    %v1196 = vadd.f32 %v1195, 1.0
    %v1197 = vrcp.pop %v1196
    %v1198 = vmul.f32 1.0, %v1197
    %v1199 = vtanh.pop %v1190
    %v1200 = vmul.f32 %v1198, %v1000
    %1202 = vrot.lane.b32.xlu0 %v1199, 64
    %v1203 = vpop.permute.xlu0 %1202
    %v1205 = vmul.f32 %v1198, %v1203
    %1207 = vrot.lane.b32.xlu0 %v1205, 32
    %v1208 = vpop.permute.xlu0 %1207
    %v1210 = vadd.f32 %v1200, %v1208
    %v1211 = vtanh.pop %v1210
    %1213 = vrot.lane.b32.xlu0 %v1211, 64
    %v1214 = vpop.permute.xlu0 %1213
    %v1216 = vmul.f32 %v1198, %v1214
    %1218 = vrot.lane.b32.xlu0 %v1112, 32
    %v1219 = vpop.permute.xlu0 %1218
    %1222 = vrot.lane.b32.xlu0 %v1216, 64
    %v1223 = vpop.permute.xlu0 %1222
    %v1225 = vsel %vm61, %v1219, %v1223
    %v1227 = vsel %vm178, %v1225, 0
    %1229 = vmatprep.subr.mxu0 0.0
    %1230 = vmatpush1.msra.mxu0 0.0
    %1231 = vmatprep.subr.mxu0 0.0
    %1232 = vmatpush1.msra.mxu0 0.0
    %1233 = vmatprep.subr.mxu0 0.0
    %1234 = vmatpush1.msra.mxu0 0.0
    %1235 = vmatprep.subr.mxu0 0.0
    %1236 = vmatpush1.msra.mxu0 0.0
    %1237 = vmatprep.subr.mxu0 0.0
    %1238 = vmatpush1.msra.mxu0 0.0
    %1239 = vmatprep.subr.mxu0 0.0
    %1240 = vmatpush1.msra.mxu0 0.0
    %1241 = vmatprep.subr.mxu0 0.0
    %1242 = vmatpush1.msra.mxu0 0.0
    %1243 = vmatprep.subr.mxu0 0.0
    %1244 = vmatpush1.msra.mxu0 0.0
    %1245 = vmatprep.subr.mxu0 0.0
    %1246 = vmatpush1.msra.mxu0 %v54
    %1247 = vmatprep.subr.mxu0 0.0
    %1248 = vmatpush1.msra.mxu0 %v53
    %1249 = vmatprep.subr.mxu0 0.0
    %1250 = vmatpush1.msra.mxu0 %v52
    %1251 = vmatprep.subr.mxu0 0.0
    %1252 = vmatpush1.msra.mxu0 %v51
    %1253 = vmatprep.subr.mxu0 0.0
    %1254 = vmatpush1.msra.mxu0 %v50
    %1255 = vmatprep.subr.mxu0 0.0
    %1256 = vmatpush1.msra.mxu0 %v49
    %1257 = vmatprep.subr.mxu0 0.0
    %1258 = vmatpush1.msra.mxu0 %v48
    %1259 = vmatprep.subr.mxu0 0.0
    %1260 = vmatpush1.msra.mxu0 %v47
    %1261 = vmatprep.subr.mxu0 0.0
    %1262 = vmatpush2.msra.mxu0 0.0
    %1263 = vmatprep.subr.mxu0 0.0
    %1264 = vmatpush2.msra.mxu0 0.0
    %1265 = vmatprep.subr.mxu0 0.0
    %1266 = vmatpush2.msra.mxu0 0.0
    %1267 = vmatprep.subr.mxu0 0.0
    %1268 = vmatpush2.msra.mxu0 0.0
    %1269 = vmatprep.subr.mxu0 0.0
    %1270 = vmatpush2.msra.mxu0 0.0
    %1271 = vmatprep.subr.mxu0 0.0
    %1272 = vmatpush2.msra.mxu0 0.0
    %1273 = vmatprep.subr.mxu0 0.0
    %1274 = vmatpush2.msra.mxu0 0.0
    %1275 = vmatprep.subr.mxu0 0.0
    %1276 = vmatpush2.msra.mxu0 0.0
    %1277 = vmatprep.subr.mxu0 0.0
    %1278 = vmatpush2.msra.mxu0 0.0
    %1279 = vmatprep.subr.mxu0 0.0
    %1280 = vmatpush2.msra.mxu0 0.0
    %1281 = vmatprep.subr.mxu0 0.0
    %1282 = vmatpush2.msra.mxu0 0.0
    %1283 = vmatprep.subr.mxu0 0.0
    %1284 = vmatpush2.msra.mxu0 0.0
    %1285 = vmatprep.subr.mxu0 0.0
    %1286 = vmatpush2.msra.mxu0 0.0
    %1287 = vmatprep.subr.mxu0 0.0
    %1288 = vmatpush2.msra.mxu0 0.0
    %1289 = vmatprep.subr.mxu0 0.0
    %1290 = vmatpush2.msra.mxu0 0.0
    %1291 = vmatprep.subr.mxu0 0.0
    %1292 = vmatpush2.msra.mxu0 0.0
    %1293 = vmatprep.mubr.f32.mxu0 0.0
    %1294 = vmatmul.mubr.f32.gmra.mxu0 %v1227
    %v1295 = vpop.f32.mrf.mxu0
    %v1296 = vadd.f32 %v176, %v1295
    %v1297 = vpop.f32.mrf.mxu0
    %1298 = vdwg.mxu0
    %v1299 = vxor.u32 %v1296, 2147483648
    %v1300 = vmul.f32 %v1299, 1.442695
    %v1301 = vpow.pop %v1300
    %v1302 = vadd.f32 %v1301, 1.0
    %v1303 = vrcp.pop %v1302
    %v1304 = vmul.f32 1.0, %v1303
    %v1305 = vtanh.pop %v1296
    %v1306 = vmul.f32 %v1304, %v1106
    %1308 = vrot.lane.b32.xlu0 %v1305, 64
    %v1309 = vpop.permute.xlu0 %1308
    %v1311 = vmul.f32 %v1304, %v1309
    %1313 = vrot.lane.b32.xlu0 %v1311, 32
    %v1314 = vpop.permute.xlu0 %1313
    %v1316 = vadd.f32 %v1306, %v1314
    %v1317 = vtanh.pop %v1316
    %1319 = vrot.lane.b32.xlu0 %v1317, 64
    %v1320 = vpop.permute.xlu0 %1319
    %v1322 = vmul.f32 %v1304, %v1320
    %1323 = vrot.lane.b32.xlu0 %v1216, 32
    %v1324 = vpop.permute.xlu0 %1323
    %1326 = vrot.lane.b32.xlu0 %v41, 112
    %v1327 = vpop.permute.xlu0 %1326
    %v1329 = vsel %vm61, %v1324, %v1327
    %v1331 = vsel %vm69, %v1329, 0
    %1333 = vmatprep.subr.mxu0 0.0
    %1334 = vmatpush1.msra.mxu0 0.0
    %1335 = vmatprep.subr.mxu0 0.0
    %1336 = vmatpush1.msra.mxu0 0.0
    %1337 = vmatprep.subr.mxu0 0.0
    %1338 = vmatpush1.msra.mxu0 0.0
    %1339 = vmatprep.subr.mxu0 0.0
    %1340 = vmatpush1.msra.mxu0 0.0
    %1341 = vmatprep.subr.mxu0 0.0
    %1342 = vmatpush1.msra.mxu0 0.0
    %1343 = vmatprep.subr.mxu0 0.0
    %1344 = vmatpush1.msra.mxu0 0.0
    %1345 = vmatprep.subr.mxu0 0.0
    %1346 = vmatpush1.msra.mxu0 0.0
    %1347 = vmatprep.subr.mxu0 0.0
    %1348 = vmatpush1.msra.mxu0 0.0
    %1349 = vmatprep.subr.mxu0 0.0
    %1350 = vmatpush1.msra.mxu0 0.0
    %1351 = vmatprep.subr.mxu0 0.0
    %1352 = vmatpush1.msra.mxu0 0.0
    %1353 = vmatprep.subr.mxu0 0.0
    %1354 = vmatpush1.msra.mxu0 0.0
    %1355 = vmatprep.subr.mxu0 0.0
    %1356 = vmatpush1.msra.mxu0 %v46
    %1357 = vmatprep.subr.mxu0 0.0
    %1358 = vmatpush1.msra.mxu0 %v45
    %1359 = vmatprep.subr.mxu0 0.0
    %1360 = vmatpush1.msra.mxu0 %v44
    %1361 = vmatprep.subr.mxu0 0.0
    %1362 = vmatpush1.msra.mxu0 %v43
    %1363 = vmatprep.subr.mxu0 0.0
    %1364 = vmatpush1.msra.mxu0 %v42
    %1365 = vmatprep.subr.mxu0 0.0
    %1366 = vmatpush2.msra.mxu0 0.0
    %1367 = vmatprep.subr.mxu0 0.0
    %1368 = vmatpush2.msra.mxu0 0.0
    %1369 = vmatprep.subr.mxu0 0.0
    %1370 = vmatpush2.msra.mxu0 0.0
    %1371 = vmatprep.subr.mxu0 0.0
    %1372 = vmatpush2.msra.mxu0 0.0
    %1373 = vmatprep.subr.mxu0 0.0
    %1374 = vmatpush2.msra.mxu0 0.0
    %1375 = vmatprep.subr.mxu0 0.0
    %1376 = vmatpush2.msra.mxu0 0.0
    %1377 = vmatprep.subr.mxu0 0.0
    %1378 = vmatpush2.msra.mxu0 0.0
    %1379 = vmatprep.subr.mxu0 0.0
    %1380 = vmatpush2.msra.mxu0 0.0
    %1381 = vmatprep.subr.mxu0 0.0
    %1382 = vmatpush2.msra.mxu0 0.0
    %1383 = vmatprep.subr.mxu0 0.0
    %1384 = vmatpush2.msra.mxu0 0.0
    %1385 = vmatprep.subr.mxu0 0.0
    %1386 = vmatpush2.msra.mxu0 0.0
    %1387 = vmatprep.subr.mxu0 0.0
    %1388 = vmatpush2.msra.mxu0 0.0
    %1389 = vmatprep.subr.mxu0 0.0
    %1390 = vmatpush2.msra.mxu0 0.0
    %1391 = vmatprep.subr.mxu0 0.0
    %1392 = vmatpush2.msra.mxu0 0.0
    %1393 = vmatprep.subr.mxu0 0.0
    %1394 = vmatpush2.msra.mxu0 0.0
    %1395 = vmatprep.subr.mxu0 0.0
    %1396 = vmatpush2.msra.mxu0 0.0
    %1397 = vmatprep.mubr.f32.mxu0 0.0
    %1398 = vmatmul.mubr.f32.gmra.mxu0 %v1331
    %v1399 = vpop.f32.mrf.mxu0
    %v1400 = vadd.f32 %v67, %v1399
    %v1401 = vpop.f32.mrf.mxu0
    %1402 = vdwg.mxu0
    %v1403 = vxor.u32 %v1400, 2147483648
    %v1404 = vmul.f32 %v1403, 1.442695
    %v1405 = vpow.pop %v1404
    %v1406 = vadd.f32 %v1405, 1.0
    %v1407 = vrcp.pop %v1406
    %v1408 = vmul.f32 1.0, %v1407
    %v1409 = vtanh.pop %v1400
    %v1410 = vmul.f32 %v1408, %v1210
    %1412 = vrot.lane.b32.xlu0 %v1409, 64
    %v1413 = vpop.permute.xlu0 %1412
    %v1415 = vmul.f32 %v1408, %v1413
    %1417 = vrot.lane.b32.xlu0 %v1415, 32
    %v1418 = vpop.permute.xlu0 %1417
    %v1420 = vadd.f32 %v1410, %v1418
    %v1421 = vtanh.pop %v1420
    %1423 = vrot.lane.b32.xlu0 %v1421, 64
    %v1424 = vpop.permute.xlu0 %1423
    %v1426 = vmul.f32 %v1408, %v1424
    %1428 = vrot.lane.b32.xlu0 %v1322, 32
    %v1429 = vpop.permute.xlu0 %1428
    %1432 = vrot.lane.b32.xlu0 %v1426, 64
    %v1433 = vpop.permute.xlu0 %1432
    %v1435 = vsel %vm61, %v1429, %v1433
    %v1437 = vsel %vm178, %v1435, 0
    %1439 = vmatprep.subr.mxu0 0.0
    %1440 = vmatpush1.msra.mxu0 0.0
    %1441 = vmatprep.subr.mxu0 0.0
    %1442 = vmatpush1.msra.mxu0 0.0
    %1443 = vmatprep.subr.mxu0 0.0
    %1444 = vmatpush1.msra.mxu0 0.0
    %1445 = vmatprep.subr.mxu0 0.0
    %1446 = vmatpush1.msra.mxu0 0.0
    %1447 = vmatprep.subr.mxu0 0.0
    %1448 = vmatpush1.msra.mxu0 0.0
    %1449 = vmatprep.subr.mxu0 0.0
    %1450 = vmatpush1.msra.mxu0 0.0
    %1451 = vmatprep.subr.mxu0 0.0
    %1452 = vmatpush1.msra.mxu0 0.0
    %1453 = vmatprep.subr.mxu0 0.0
    %1454 = vmatpush1.msra.mxu0 0.0
    %1455 = vmatprep.subr.mxu0 0.0
    %1456 = vmatpush1.msra.mxu0 %v54
    %1457 = vmatprep.subr.mxu0 0.0
    %1458 = vmatpush1.msra.mxu0 %v53
    %1459 = vmatprep.subr.mxu0 0.0
    %1460 = vmatpush1.msra.mxu0 %v52
    %1461 = vmatprep.subr.mxu0 0.0
    %1462 = vmatpush1.msra.mxu0 %v51
    %1463 = vmatprep.subr.mxu0 0.0
    %1464 = vmatpush1.msra.mxu0 %v50
    %1465 = vmatprep.subr.mxu0 0.0
    %1466 = vmatpush1.msra.mxu0 %v49
    %1467 = vmatprep.subr.mxu0 0.0
    %1468 = vmatpush1.msra.mxu0 %v48
    %1469 = vmatprep.subr.mxu0 0.0
    %1470 = vmatpush1.msra.mxu0 %v47
    %1471 = vmatprep.subr.mxu0 0.0
    %1472 = vmatpush2.msra.mxu0 0.0
    %1473 = vmatprep.subr.mxu0 0.0
    %1474 = vmatpush2.msra.mxu0 0.0
    %1475 = vmatprep.subr.mxu0 0.0
    %1476 = vmatpush2.msra.mxu0 0.0
    %1477 = vmatprep.subr.mxu0 0.0
    %1478 = vmatpush2.msra.mxu0 0.0
    %1479 = vmatprep.subr.mxu0 0.0
    %1480 = vmatpush2.msra.mxu0 0.0
    %1481 = vmatprep.subr.mxu0 0.0
    %1482 = vmatpush2.msra.mxu0 0.0
    %1483 = vmatprep.subr.mxu0 0.0
    %1484 = vmatpush2.msra.mxu0 0.0
    %1485 = vmatprep.subr.mxu0 0.0
    %1486 = vmatpush2.msra.mxu0 0.0
    %1487 = vmatprep.subr.mxu0 0.0
    %1488 = vmatpush2.msra.mxu0 0.0
    %1489 = vmatprep.subr.mxu0 0.0
    %1490 = vmatpush2.msra.mxu0 0.0
    %1491 = vmatprep.subr.mxu0 0.0
    %1492 = vmatpush2.msra.mxu0 0.0
    %1493 = vmatprep.subr.mxu0 0.0
    %1494 = vmatpush2.msra.mxu0 0.0
    %1495 = vmatprep.subr.mxu0 0.0
    %1496 = vmatpush2.msra.mxu0 0.0
    %1497 = vmatprep.subr.mxu0 0.0
    %1498 = vmatpush2.msra.mxu0 0.0
    %1499 = vmatprep.subr.mxu0 0.0
    %1500 = vmatpush2.msra.mxu0 0.0
    %1501 = vmatprep.subr.mxu0 0.0
    %1502 = vmatpush2.msra.mxu0 0.0
    %1503 = vmatprep.mubr.f32.mxu0 0.0
    %1504 = vmatmul.mubr.f32.gmra.mxu0 %v1437
    %v1505 = vpop.f32.mrf.mxu0
    %v1506 = vadd.f32 %v176, %v1505
    %v1507 = vpop.f32.mrf.mxu0
    %1508 = vdwg.mxu0
    %v1509 = vxor.u32 %v1506, 2147483648
    %v1510 = vmul.f32 %v1509, 1.442695
    %v1511 = vpow.pop %v1510
    %v1512 = vadd.f32 %v1511, 1.0
    %v1513 = vrcp.pop %v1512
    %v1514 = vmul.f32 1.0, %v1513
    %v1515 = vtanh.pop %v1506
    %v1516 = vmul.f32 %v1514, %v1316
    %1518 = vrot.lane.b32.xlu0 %v1515, 64
    %v1519 = vpop.permute.xlu0 %1518
    %v1521 = vmul.f32 %v1514, %v1519
    %1523 = vrot.lane.b32.xlu0 %v1521, 32
    %v1524 = vpop.permute.xlu0 %1523
    %v1526 = vadd.f32 %v1516, %v1524
    %v1527 = vtanh.pop %v1526
    %1529 = vrot.lane.b32.xlu0 %v1527, 64
    %v1530 = vpop.permute.xlu0 %1529
    %v1532 = vmul.f32 %v1514, %v1530
    %1533 = vrot.lane.b32.xlu0 %v1426, 32
    %v1534 = vpop.permute.xlu0 %1533
    %1536 = vrot.lane.b32.xlu0 %v41, 104
    %v1537 = vpop.permute.xlu0 %1536
    %v1539 = vsel %vm61, %v1534, %v1537
    %v1541 = vsel %vm69, %v1539, 0
    %1543 = vmatprep.subr.mxu0 0.0
    %1544 = vmatpush1.msra.mxu0 0.0
    %1545 = vmatprep.subr.mxu0 0.0
    %1546 = vmatpush1.msra.mxu0 0.0
    %1547 = vmatprep.subr.mxu0 0.0
    %1548 = vmatpush1.msra.mxu0 0.0
    %1549 = vmatprep.subr.mxu0 0.0
    %1550 = vmatpush1.msra.mxu0 0.0
    %1551 = vmatprep.subr.mxu0 0.0
    %1552 = vmatpush1.msra.mxu0 0.0
    %1553 = vmatprep.subr.mxu0 0.0
    %1554 = vmatpush1.msra.mxu0 0.0
    %1555 = vmatprep.subr.mxu0 0.0
    %1556 = vmatpush1.msra.mxu0 0.0
    %1557 = vmatprep.subr.mxu0 0.0
    %1558 = vmatpush1.msra.mxu0 0.0
    %1559 = vmatprep.subr.mxu0 0.0
    %1560 = vmatpush1.msra.mxu0 0.0
    %1561 = vmatprep.subr.mxu0 0.0
    %1562 = vmatpush1.msra.mxu0 0.0
    %1563 = vmatprep.subr.mxu0 0.0
    %1564 = vmatpush1.msra.mxu0 0.0
    %1565 = vmatprep.subr.mxu0 0.0
    %1566 = vmatpush1.msra.mxu0 %v46
    %1567 = vmatprep.subr.mxu0 0.0
    %1568 = vmatpush1.msra.mxu0 %v45
    %1569 = vmatprep.subr.mxu0 0.0
    %1570 = vmatpush1.msra.mxu0 %v44
    %1571 = vmatprep.subr.mxu0 0.0
    %1572 = vmatpush1.msra.mxu0 %v43
    %1573 = vmatprep.subr.mxu0 0.0
    %1574 = vmatpush1.msra.mxu0 %v42
    %1575 = vmatprep.subr.mxu0 0.0
    %1576 = vmatpush2.msra.mxu0 0.0
    %1577 = vmatprep.subr.mxu0 0.0
    %1578 = vmatpush2.msra.mxu0 0.0
    %1579 = vmatprep.subr.mxu0 0.0
    %1580 = vmatpush2.msra.mxu0 0.0
    %1581 = vmatprep.subr.mxu0 0.0
    %1582 = vmatpush2.msra.mxu0 0.0
    %1583 = vmatprep.subr.mxu0 0.0
    %1584 = vmatpush2.msra.mxu0 0.0
    %1585 = vmatprep.subr.mxu0 0.0
    %1586 = vmatpush2.msra.mxu0 0.0
    %1587 = vmatprep.subr.mxu0 0.0
    %1588 = vmatpush2.msra.mxu0 0.0
    %1589 = vmatprep.subr.mxu0 0.0
    %1590 = vmatpush2.msra.mxu0 0.0
    %1591 = vmatprep.subr.mxu0 0.0
    %1592 = vmatpush2.msra.mxu0 0.0
    %1593 = vmatprep.subr.mxu0 0.0
    %1594 = vmatpush2.msra.mxu0 0.0
    %1595 = vmatprep.subr.mxu0 0.0
    %1596 = vmatpush2.msra.mxu0 0.0
    %1597 = vmatprep.subr.mxu0 0.0
    %1598 = vmatpush2.msra.mxu0 0.0
    %1599 = vmatprep.subr.mxu0 0.0
    %1600 = vmatpush2.msra.mxu0 0.0
    %1601 = vmatprep.subr.mxu0 0.0
    %1602 = vmatpush2.msra.mxu0 0.0
    %1603 = vmatprep.subr.mxu0 0.0
    %1604 = vmatpush2.msra.mxu0 0.0
    %1605 = vmatprep.subr.mxu0 0.0
    %1606 = vmatpush2.msra.mxu0 0.0
    %1607 = vmatprep.mubr.f32.mxu0 0.0
    %1608 = vmatmul.mubr.f32.gmra.mxu0 %v1541
    %v1609 = vpop.f32.mrf.mxu0
    %v1610 = vadd.f32 %v67, %v1609
    %v1611 = vpop.f32.mrf.mxu0
    %1612 = vdwg.mxu0
    %v1613 = vxor.u32 %v1610, 2147483648
    %v1614 = vmul.f32 %v1613, 1.442695
    %v1615 = vpow.pop %v1614
    %v1616 = vadd.f32 %v1615, 1.0
    %v1617 = vrcp.pop %v1616
    %v1618 = vmul.f32 1.0, %v1617
    %v1619 = vtanh.pop %v1610
    %v1620 = vmul.f32 %v1618, %v1420
    %1622 = vrot.lane.b32.xlu0 %v1619, 64
    %v1623 = vpop.permute.xlu0 %1622
    %v1625 = vmul.f32 %v1618, %v1623
    %1627 = vrot.lane.b32.xlu0 %v1625, 32
    %v1628 = vpop.permute.xlu0 %1627
    %v1630 = vadd.f32 %v1620, %v1628
    %v1631 = vtanh.pop %v1630
    %1633 = vrot.lane.b32.xlu0 %v1631, 64
    %v1634 = vpop.permute.xlu0 %1633
    %v1636 = vmul.f32 %v1618, %v1634
    %1638 = vrot.lane.b32.xlu0 %v1532, 32
    %v1639 = vpop.permute.xlu0 %1638
    %1642 = vrot.lane.b32.xlu0 %v1636, 64
    %v1643 = vpop.permute.xlu0 %1642
    %v1645 = vsel %vm61, %v1639, %v1643
    %v1647 = vsel %vm178, %v1645, 0
    %1649 = vmatprep.subr.mxu0 0.0
    %1650 = vmatpush1.msra.mxu0 0.0
    %1651 = vmatprep.subr.mxu0 0.0
    %1652 = vmatpush1.msra.mxu0 0.0
    %1653 = vmatprep.subr.mxu0 0.0
    %1654 = vmatpush1.msra.mxu0 0.0
    %1655 = vmatprep.subr.mxu0 0.0
    %1656 = vmatpush1.msra.mxu0 0.0
    %1657 = vmatprep.subr.mxu0 0.0
    %1658 = vmatpush1.msra.mxu0 0.0
    %1659 = vmatprep.subr.mxu0 0.0
    %1660 = vmatpush1.msra.mxu0 0.0
    %1661 = vmatprep.subr.mxu0 0.0
    %1662 = vmatpush1.msra.mxu0 0.0
    %1663 = vmatprep.subr.mxu0 0.0
    %1664 = vmatpush1.msra.mxu0 0.0
    %1665 = vmatprep.subr.mxu0 0.0
    %1666 = vmatpush1.msra.mxu0 %v54
    %1667 = vmatprep.subr.mxu0 0.0
    %1668 = vmatpush1.msra.mxu0 %v53
    %1669 = vmatprep.subr.mxu0 0.0
    %1670 = vmatpush1.msra.mxu0 %v52
    %1671 = vmatprep.subr.mxu0 0.0
    %1672 = vmatpush1.msra.mxu0 %v51
    %1673 = vmatprep.subr.mxu0 0.0
    %1674 = vmatpush1.msra.mxu0 %v50
    %1675 = vmatprep.subr.mxu0 0.0
    %1676 = vmatpush1.msra.mxu0 %v49
    %1677 = vmatprep.subr.mxu0 0.0
    %1678 = vmatpush1.msra.mxu0 %v48
    %1679 = vmatprep.subr.mxu0 0.0
    %1680 = vmatpush1.msra.mxu0 %v47
    %1681 = vmatprep.subr.mxu0 0.0
    %1682 = vmatpush2.msra.mxu0 0.0
    %1683 = vmatprep.subr.mxu0 0.0
    %1684 = vmatpush2.msra.mxu0 0.0
    %1685 = vmatprep.subr.mxu0 0.0
    %1686 = vmatpush2.msra.mxu0 0.0
    %1687 = vmatprep.subr.mxu0 0.0
    %1688 = vmatpush2.msra.mxu0 0.0
    %1689 = vmatprep.subr.mxu0 0.0
    %1690 = vmatpush2.msra.mxu0 0.0
    %1691 = vmatprep.subr.mxu0 0.0
    %1692 = vmatpush2.msra.mxu0 0.0
    %1693 = vmatprep.subr.mxu0 0.0
    %1694 = vmatpush2.msra.mxu0 0.0
    %1695 = vmatprep.subr.mxu0 0.0
    %1696 = vmatpush2.msra.mxu0 0.0
    %1697 = vmatprep.subr.mxu0 0.0
    %1698 = vmatpush2.msra.mxu0 0.0
    %1699 = vmatprep.subr.mxu0 0.0
    %1700 = vmatpush2.msra.mxu0 0.0
    %1701 = vmatprep.subr.mxu0 0.0
    %1702 = vmatpush2.msra.mxu0 0.0
    %1703 = vmatprep.subr.mxu0 0.0
    %1704 = vmatpush2.msra.mxu0 0.0
    %1705 = vmatprep.subr.mxu0 0.0
    %1706 = vmatpush2.msra.mxu0 0.0
    %1707 = vmatprep.subr.mxu0 0.0
    %1708 = vmatpush2.msra.mxu0 0.0
    %1709 = vmatprep.subr.mxu0 0.0
    %1710 = vmatpush2.msra.mxu0 0.0
    %1711 = vmatprep.subr.mxu0 0.0
    %1712 = vmatpush2.msra.mxu0 0.0
    %1713 = vmatprep.mubr.f32.mxu0 0.0
    %1714 = vmatmul.mubr.f32.gmra.mxu0 %v1647
    %v1715 = vpop.f32.mrf.mxu0
    %v1716 = vadd.f32 %v176, %v1715
    %v1717 = vpop.f32.mrf.mxu0
    %1718 = vdwg.mxu0
    %v1719 = vxor.u32 %v1716, 2147483648
    %v1720 = vmul.f32 %v1719, 1.442695
    %v1721 = vpow.pop %v1720
    %v1722 = vadd.f32 %v1721, 1.0
    %v1723 = vrcp.pop %v1722
    %v1724 = vmul.f32 1.0, %v1723
    %v1725 = vtanh.pop %v1716
    %v1726 = vmul.f32 %v1724, %v1526
    %1728 = vrot.lane.b32.xlu0 %v1725, 64
    %v1729 = vpop.permute.xlu0 %1728
    %v1731 = vmul.f32 %v1724, %v1729
    %1733 = vrot.lane.b32.xlu0 %v1731, 32
    %v1734 = vpop.permute.xlu0 %1733
    %v1736 = vadd.f32 %v1726, %v1734
    %v1737 = vtanh.pop %v1736
    %1739 = vrot.lane.b32.xlu0 %v1737, 64
    %v1740 = vpop.permute.xlu0 %1739
    %v1742 = vmul.f32 %v1724, %v1740
    %v1743 = vld [vmem:[%s5] sm:$0xff]
    %v1744 = vld [vmem:[%s5 + $0x8] sm:$0xff]
    %v1745 = vld [vmem:[%s5 + $0x10] sm:$0xff]
    %v1746 = vld [vmem:[%s5 + $0x18] sm:$0xff]
    %v1747 = vld [vmem:[%s6] sm:$0x1]
    %v1749 = vlaneseq
    %v1750 = vshrl.u32 %v1749, 7
    %v1751 = vsub.s32 0, %v1750
    %v1752 = vrot.slane %v1747, %v1751
    %1755 = vrot.lane.b32.xlu0 %v1742, 32
    %v1756 = vpop.permute.xlu0 %1755
    %v1757 = vsel %vm61, %v1756, 0
    %1759 = vmatprep.subr.mxu0 0.0
    %1760 = vmatpush1.msra.mxu0 0.0
    %1761 = vmatprep.subr.mxu0 0.0
    %1762 = vmatpush1.msra.mxu0 0.0
    %1763 = vmatprep.subr.mxu0 0.0
    %1764 = vmatpush1.msra.mxu0 0.0
    %1765 = vmatprep.subr.mxu0 0.0
    %1766 = vmatpush1.msra.mxu0 0.0
    %1767 = vmatprep.subr.mxu0 0.0
    %1768 = vmatpush1.msra.mxu0 0.0
    %1769 = vmatprep.subr.mxu0 0.0
    %1770 = vmatpush1.msra.mxu0 0.0
    %1771 = vmatprep.subr.mxu0 0.0
    %1772 = vmatpush1.msra.mxu0 0.0
    %1773 = vmatprep.subr.mxu0 0.0
    %1774 = vmatpush1.msra.mxu0 0.0
    %1775 = vmatprep.subr.mxu0 0.0
    %1776 = vmatpush1.msra.mxu0 0.0
    %1777 = vmatprep.subr.mxu0 0.0
    %1778 = vmatpush1.msra.mxu0 0.0
    %1779 = vmatprep.subr.mxu0 0.0
    %1780 = vmatpush1.msra.mxu0 0.0
    %1781 = vmatprep.subr.mxu0 0.0
    %1782 = vmatpush1.msra.mxu0 0.0
    %1783 = vmatprep.subr.mxu0 0.0
    %1784 = vmatpush1.msra.mxu0 %v1746
    %1785 = vmatprep.subr.mxu0 0.0
    %1786 = vmatpush1.msra.mxu0 %v1745
    %1787 = vmatprep.subr.mxu0 0.0
    %1788 = vmatpush1.msra.mxu0 %v1744
    %1789 = vmatprep.subr.mxu0 0.0
    %1790 = vmatpush1.msra.mxu0 %v1743
    %1791 = vmatprep.subr.mxu0 0.0
    %1792 = vmatpush2.msra.mxu0 0.0
    %1793 = vmatprep.subr.mxu0 0.0
    %1794 = vmatpush2.msra.mxu0 0.0
    %1795 = vmatprep.subr.mxu0 0.0
    %1796 = vmatpush2.msra.mxu0 0.0
    %1797 = vmatprep.subr.mxu0 0.0
    %1798 = vmatpush2.msra.mxu0 0.0
    %1799 = vmatprep.subr.mxu0 0.0
    %1800 = vmatpush2.msra.mxu0 0.0
    %1801 = vmatprep.subr.mxu0 0.0
    %1802 = vmatpush2.msra.mxu0 0.0
    %1803 = vmatprep.subr.mxu0 0.0
    %1804 = vmatpush2.msra.mxu0 0.0
    %1805 = vmatprep.subr.mxu0 0.0
    %1806 = vmatpush2.msra.mxu0 0.0
    %1807 = vmatprep.subr.mxu0 0.0
    %1808 = vmatpush2.msra.mxu0 0.0
    %1809 = vmatprep.subr.mxu0 0.0
    %1810 = vmatpush2.msra.mxu0 0.0
    %1811 = vmatprep.subr.mxu0 0.0
    %1812 = vmatpush2.msra.mxu0 0.0
    %1813 = vmatprep.subr.mxu0 0.0
    %1814 = vmatpush2.msra.mxu0 0.0
    %1815 = vmatprep.subr.mxu0 0.0
    %1816 = vmatpush2.msra.mxu0 0.0
    %1817 = vmatprep.subr.mxu0 0.0
    %1818 = vmatpush2.msra.mxu0 0.0
    %1819 = vmatprep.subr.mxu0 0.0
    %1820 = vmatpush2.msra.mxu0 0.0
    %1821 = vmatprep.subr.mxu0 0.0
    %1822 = vmatpush2.msra.mxu0 0.0
    %1823 = vmatprep.mubr.f32.mxu0 0.0
    %1824 = vmatmul.mubr.f32.gmra.mxu0 %v1757
    %v1825 = vpop.f32.mrf.mxu0
    %v1826 = vadd.f32 %v1752, %v1825
    %v1827 = vpop.f32.mrf.mxu0
    %1828 = vdwg.mxu0
    %vm1829 = vcmask 91136
    %1830 = vst.msk [vmem:[#allocation5] sm:$0x3] %vm1829, %v1826
    // Predicated region
    $region34: #{lstm_ball_forward.1} parent=1 // pred_check
      _
    $region35: #{lstm_ball_forward.1} parent=1 // pred_check_branch
      %1832 = sbr.rel (0) target = $region37
    $region36: #{lstm_ball_forward.1} parent=1 // pred_region
      %s1834 = ssub.s32 32, 32
      %1835 = vsyncadd [#allocation4], %s1834
      %s1837 = sshll.u32 [#allocation5], 4
      %s1838 = int_to_ptr.vmem [resolvable:$true] %s1837
      %1840 = dma.vmem_to_hbm [thread:$0]  %s1838, 32, %s7, [#allocation4]
    $region37: #{lstm_ball_forward.1} parent=1 // pred_fallthru
      _
    // Predicated region
    $region38: #{lstm_ball_forward.1} parent=1 // pred_check
      _
    $region39: #{lstm_ball_forward.1} parent=1 // pred_check_branch
      %1842 = sbr.rel (0) target = $region41
    $region40: #{lstm_ball_forward.1} parent=1 // pred_region
      %1843 = dma.done [#allocation4], 32
    $region41: #{lstm_ball_forward.1} parent=1 // pred_fallthru
      _
    %1844 = vsyncpa [#allocation3], 1
    %1845 = vsyncpa [#allocation4], 1

</llo_original>
